<compile_context>
chip_gen: v7x
topology: tpu7x:2x2x1
jax: 0.10.0
libtpu: 0.0.40
codegen_flags: <defaults>
</compile_context>

<pallas_src>
import functools
import math

import jax
import jax.numpy as jnp
from jax.experimental import pallas as pl
from jax.experimental.pallas import tpu as pltpu


# --------------------------------------------------------------------------
# Fused residual-attention-block kernel
# --------------------------------------------------------------------------
def _block_kernel(x_ref,
                  ln1_g_ref, ln1_b_ref,
                  wq_ref, bq_ref, wk_ref, bk_ref, wv_ref, bv_ref,
                  wo_ref, bo_ref,
                  ln2_g_ref, ln2_b_ref,
                  wfc_ref, bfc_ref,
                  wproj_ref, bproj_ref,
                  out_ref,
                  *, n_head):
    x = x_ref[0]                                   # (S, D) f32 residual stream
    S, D = x.shape
    head_dim = D // n_head
    scale = 1.0 / math.sqrt(head_dim)
    cd = wq_ref.dtype                              # matmul operand dtype (bf16)

    def layer_norm(v, g_ref, b_ref):               # f32 LayerNorm, eps=1e-5
        mu = jnp.mean(v, axis=-1, keepdims=True)
        var = jnp.mean(jnp.square(v - mu), axis=-1, keepdims=True)
        return (v - mu) * jax.lax.rsqrt(var + 1e-5) * g_ref[...] + b_ref[...]

    # ---------------- attention sub-block ----------------
    xn = layer_norm(x, ln1_g_ref, ln1_b_ref).astype(cd)
    q = jnp.dot(xn, wq_ref[...], preferred_element_type=jnp.float32) + bq_ref[...]
    k = jnp.dot(xn, wk_ref[...], preferred_element_type=jnp.float32) + bk_ref[...]
    v = jnp.dot(xn, wv_ref[...], preferred_element_type=jnp.float32) + bv_ref[...]

    parts = []
    for h in range(n_head):                        # static unroll over heads
        sl = slice(h * head_dim, (h + 1) * head_dim)
        qh = (q[:, sl] * scale).astype(cd)         # (S, hd)
        kh = k[:, sl].astype(cd)
        vh = v[:, sl].astype(cd)
        # scores = q @ k^T without an explicit transpose (contract last dims)
        s = jax.lax.dot_general(qh, kh, (((1,), (1,)), ((), ())),
                                preferred_element_type=jnp.float32)   # (S, S)
        p = jax.nn.softmax(s, axis=-1)             # f32 softmax
        parts.append(jnp.dot(p.astype(cd), vh,
                             preferred_element_type=jnp.float32))     # (S, hd)
    attn = jnp.concatenate(parts, axis=-1)         # (S, D) f32

    attn = jnp.dot(attn.astype(cd), wo_ref[...],
                   preferred_element_type=jnp.float32) + bo_ref[...]
    y = x + attn                                   # residual 1 (f32)

    # ---------------- MLP sub-block ----------------
    yn = layer_norm(y, ln2_g_ref, ln2_b_ref).astype(cd)
    hmid = jnp.dot(yn, wfc_ref[...],
                   preferred_element_type=jnp.float32) + bfc_ref[...]  # (S, 4D)
    hmid = hmid * jax.nn.sigmoid(1.702 * hmid)     # QuickGELU (f32)
    mlp = jnp.dot(hmid.astype(cd), wproj_ref[...],
                  preferred_element_type=jnp.float32) + bproj_ref[...]

    out_ref[0] = (y + mlp).astype(out_ref.dtype)   # residual 2


# --------------------------------------------------------------------------
# Wrappers
# --------------------------------------------------------------------------
def _prep_block_params(bp, matmul_dtype):
    """Split/pre-transpose PyTorch-shaped params into kernel operands."""
    D = bp["out_w"].shape[0]
    in_w, in_b = bp["in_w"], bp["in_b"]
    wq, wk, wv = in_w[:D], in_w[D:2 * D], in_w[2 * D:]
    bq, bk, bv = in_b[:D], in_b[D:2 * D], in_b[2 * D:]
    row = lambda a: a.reshape(1, -1).astype(jnp.float32)   # biases / LN stay f32
    mat = lambda w: w.T.astype(matmul_dtype)               # y = x @ W^T, bf16
    return (
        row(bp["ln1_g"]), row(bp["ln1_b"]),
        mat(wq), row(bq),
        mat(wk), row(bk),
        mat(wv), row(bv),
        mat(bp["out_w"]), row(bp["out_b"]),
        row(bp["ln2_g"]), row(bp["ln2_b"]),
        mat(bp["fc_w"]), row(bp["fc_b"]),
        mat(bp["proj_w"]), row(bp["proj_b"]),
    )


def _residual_attention_block(x_bsd, bp, *, n_head, matmul_dtype):
    B, S, D = x_bsd.shape
    assert D % n_head == 0
    flat = _prep_block_params(bp, matmul_dtype)

    x_spec = pl.BlockSpec((1, S, D), lambda i: (i, 0, 0))
    w_specs = [pl.BlockSpec(a.shape, lambda i: (0, 0)) for a in flat]

    kernel = functools.partial(_block_kernel, n_head=n_head)
    return pl.pallas_call(
        kernel,
        out_shape=jax.ShapeDtypeStruct((B, S, D), x_bsd.dtype),
        grid_spec=pltpu.PrefetchScalarGridSpec(
            num_scalar_prefetch=0,
            grid=(B,),                       # >= 2 steps: both v7x TCs usable
            in_specs=[x_spec] + w_specs,
            out_specs=x_spec,
        ),
        compiler_params=pltpu.CompilerParams(
            dimension_semantics=("parallel",),
            vmem_limit_bytes=48 * 1024 * 1024,
        ),
    )(x_bsd, *flat)


@functools.partial(jax.jit, static_argnames=("n_head", "matmul_dtype"))
def transformer_forward(x_sbd, params, *, n_head, matmul_dtype=jnp.bfloat16):
    """x_sbd: (seq, batch, width) f32.  Returns (x1, x2, x3) like the module."""
    x_bsd = jnp.transpose(x_sbd, (1, 0, 2))        # (B, S, D) for the kernel
    x1 = _residual_attention_block(x_bsd, params["b1"],
                                   n_head=n_head, matmul_dtype=matmul_dtype)
    x2 = _residual_attention_block(x1, params["b2"],
                                   n_head=n_head, matmul_dtype=matmul_dtype)
    x3 = _residual_attention_block(x2, params["b3"],
                                   n_head=n_head, matmul_dtype=matmul_dtype)
    back = lambda a: jnp.transpose(a, (1, 0, 2))
    return back(x1), back(x2), back(x3)


# --------------------------------------------------------------------------
# Parameters (PyTorch-shaped) and a pure-JAX reference
# --------------------------------------------------------------------------
def init_params(key, width):
    D = width

    def block_params(k):
        kk = jax.random.split(k, 8)
        s_in = 1.0 / math.sqrt(D)
        s_proj = 1.0 / math.sqrt(4 * D)
        u = lambda kr, shape, s: jax.random.uniform(kr, shape, jnp.float32, -s, s)
        return {
            "ln1_g": jnp.ones((D,), jnp.float32),
            "ln1_b": jnp.zeros((D,), jnp.float32),
            "in_w": u(kk[0], (3 * D, D), s_in),    # packed qkv, (3D, D)
            "in_b": u(kk[1], (3 * D,), s_in),
            "out_w": u(kk[2], (D, D), s_in),
            "out_b": u(kk[3], (D,), s_in),
            "ln2_g": jnp.ones((D,), jnp.float32),
            "ln2_b": jnp.zeros((D,), jnp.float32),
            "fc_w": u(kk[4], (4 * D, D), s_in),
            "fc_b": u(kk[5], (4 * D,), s_in),
            "proj_w": u(kk[6], (D, 4 * D), s_proj),
            "proj_b": u(kk[7], (D,), s_proj),
        }

    k1, k2, k3 = jax.random.split(key, 3)
    return {"b1": block_params(k1), "b2": block_params(k2), "b3": block_params(k3)}


def _reference(x_sbd, params, *, n_head, matmul_dtype=jnp.float32):
    """Pure-JAX Transformer forward. matmul_dtype=float32 reproduces the exact
    PyTorch f32 math; matmul_dtype=bfloat16 matches the kernel's mixed-precision
    policy (bf16 MXU operands, f32 accumulation)."""

    def mm(a, b):
        return jnp.dot(a.astype(matmul_dtype), b.astype(matmul_dtype),
                       preferred_element_type=jnp.float32)

    def ln(v, g, b):
        mu = jnp.mean(v, axis=-1, keepdims=True)
        var = jnp.mean(jnp.square(v - mu), axis=-1, keepdims=True)
        return (v - mu) * jax.lax.rsqrt(var + 1e-5) * g + b

    def block(x, bp):
        S, B, D = x.shape
        hd = D // n_head
        scale = 1.0 / math.sqrt(hd)
        xn = ln(x, bp["ln1_g"], bp["ln1_b"]).reshape(S * B, D)
        qkv = mm(xn, bp["in_w"].T) + bp["in_b"]
        q, k, v = jnp.split(qkv, 3, axis=-1)

        def heads(t):  # (S*B, D) -> (B, H, S, hd)
            return jnp.transpose(t.reshape(S, B, n_head, hd), (1, 2, 0, 3))

        qh, kh, vh = heads(q) * scale, heads(k), heads(v)
        sc = jnp.einsum("bhqd,bhkd->bhqk", qh.astype(matmul_dtype),
                        kh.astype(matmul_dtype),
                        preferred_element_type=jnp.float32)
        p = jax.nn.softmax(sc, axis=-1)
        o = jnp.einsum("bhqk,bhkd->bhqd", p.astype(matmul_dtype),
                       vh.astype(matmul_dtype),
                       preferred_element_type=jnp.float32)
        o = jnp.transpose(o, (2, 0, 1, 3)).reshape(S * B, D)
        attn_out = (mm(o, bp["out_w"].T) + bp["out_b"]).reshape(S, B, D)
        y1 = x + attn_out
        y2 = ln(y1, bp["ln2_g"], bp["ln2_b"]).reshape(S * B, D)
        h = mm(y2, bp["fc_w"].T) + bp["fc_b"]
        h = h * jax.nn.sigmoid(1.702 * h)
        out = (mm(h, bp["proj_w"].T) + bp["proj_b"]).reshape(S, B, D)
        return y1 + out

    x1 = block(x_sbd, params["b1"])
    x2 = block(x1, params["b2"])
    x3 = block(x2, params["b3"])
    return x1, x2, x3


# --------------------------------------------------------------------------
# Test
# --------------------------------------------------------------------------
if __name__ == "__main__":
    WIDTH, HEADS, SEQ, BATCH = 64, 4, 8, 2      # small shapes for the module

    key = jax.random.PRNGKey(0)
    k_param, k_x = jax.random.split(key)
    params = init_params(k_param, WIDTH)
    x = jax.random.normal(k_x, (SEQ, BATCH, WIDTH), dtype=jnp.float32)

    x1, x2, x3 = transformer_forward(x, params, n_head=HEADS)
    jax.block_until_ready((x1, x2, x3))

    # Precision-matched reference (same bf16-operand / f32-accumulate policy).
    r1m, r2m, r3m = _reference(x, params, n_head=HEADS, matmul_dtype=jnp.bfloat16)
    for got, want in ((x1, r1m), (x2, r2m), (x3, r3m)):
        assert jnp.allclose(got, want, atol=1e-2, rtol=1e-2)

    # Full-f32 reference (exact PyTorch math); loose tolerance because the
    # kernel uses bf16 MXU operands (per performance review).
    r1f, r2f, r3f = _reference(x, params, n_head=HEADS, matmul_dtype=jnp.float32)
    for got, want in ((x1, r1f), (x2, r2f), (x3, r3f)):
        assert jnp.allclose(got, want, atol=1e-1, rtol=1e-1)

    print("KERNEL_OK")
</pallas_src>

<mosaic_0001>
module attributes {stable_mosaic.version = 11 : i64} {
  func.func @_block_kernel(%arg0: i32, %arg1: memref<1x8x64xf32, #tpu.memory_space<vmem>>, %arg2: memref<1x64xf32, #tpu.memory_space<vmem>>, %arg3: memref<1x64xf32, #tpu.memory_space<vmem>>, %arg4: memref<64x64xbf16, #tpu.memory_space<vmem>>, %arg5: memref<1x64xf32, #tpu.memory_space<vmem>>, %arg6: memref<64x64xbf16, #tpu.memory_space<vmem>>, %arg7: memref<1x64xf32, #tpu.memory_space<vmem>>, %arg8: memref<64x64xbf16, #tpu.memory_space<vmem>>, %arg9: memref<1x64xf32, #tpu.memory_space<vmem>>, %arg10: memref<64x64xbf16, #tpu.memory_space<vmem>>, %arg11: memref<1x64xf32, #tpu.memory_space<vmem>>, %arg12: memref<1x64xf32, #tpu.memory_space<vmem>>, %arg13: memref<1x64xf32, #tpu.memory_space<vmem>>, %arg14: memref<64x256xbf16, #tpu.memory_space<vmem>>, %arg15: memref<1x256xf32, #tpu.memory_space<vmem>>, %arg16: memref<256x64xbf16, #tpu.memory_space<vmem>>, %arg17: memref<1x64xf32, #tpu.memory_space<vmem>>, %arg18: memref<1x8x64xf32, #tpu.memory_space<vmem>>) attributes {dimension_semantics = [#tpu.dimension_semantics<parallel>], iteration_bounds = array<i64: 2>, scalar_prefetch = 0 : i64, scratch_operands = 0 : i64, tpu.core_type = #tpu.core_type<tc>, window_params = [{transform_indices = @transform_0, window_bounds = array<i64: 1, 8, 64>}, {pipeline_mode = #tpu.pipeline_mode<synchronous>, transform_indices = @transform_1, window_bounds = array<i64: 1, 64>}, {pipeline_mode = #tpu.pipeline_mode<synchronous>, transform_indices = @transform_2, window_bounds = array<i64: 1, 64>}, {pipeline_mode = #tpu.pipeline_mode<synchronous>, transform_indices = @transform_3, window_bounds = array<i64: 64, 64>}, {pipeline_mode = #tpu.pipeline_mode<synchronous>, transform_indices = @transform_4, window_bounds = array<i64: 1, 64>}, {pipeline_mode = #tpu.pipeline_mode<synchronous>, transform_indices = @transform_5, window_bounds = array<i64: 64, 64>}, {pipeline_mode = #tpu.pipeline_mode<synchronous>, transform_indices = @transform_6, window_bounds = array<i64: 1, 64>}, {pipeline_mode = #tpu.pipeline_mode<synchronous>, transform_indices = @transform_7, window_bounds = array<i64: 64, 64>}, {pipeline_mode = #tpu.pipeline_mode<synchronous>, transform_indices = @transform_8, window_bounds = array<i64: 1, 64>}, {pipeline_mode = #tpu.pipeline_mode<synchronous>, transform_indices = @transform_9, window_bounds = array<i64: 64, 64>}, {pipeline_mode = #tpu.pipeline_mode<synchronous>, transform_indices = @transform_10, window_bounds = array<i64: 1, 64>}, {pipeline_mode = #tpu.pipeline_mode<synchronous>, transform_indices = @transform_11, window_bounds = array<i64: 1, 64>}, {pipeline_mode = #tpu.pipeline_mode<synchronous>, transform_indices = @transform_12, window_bounds = array<i64: 1, 64>}, {pipeline_mode = #tpu.pipeline_mode<synchronous>, transform_indices = @transform_13, window_bounds = array<i64: 64, 256>}, {pipeline_mode = #tpu.pipeline_mode<synchronous>, transform_indices = @transform_14, window_bounds = array<i64: 1, 256>}, {pipeline_mode = #tpu.pipeline_mode<synchronous>, transform_indices = @transform_15, window_bounds = array<i64: 256, 64>}, {pipeline_mode = #tpu.pipeline_mode<synchronous>, transform_indices = @transform_16, window_bounds = array<i64: 1, 64>}, {transform_indices = @transform_17, window_bounds = array<i64: 1, 8, 64>}]} {
    %c0 = arith.constant 0 : index
    %c0_0 = arith.constant 0 : index
    %c0_1 = arith.constant 0 : index
    %0 = vector.load %arg1[%c0, %c0_0, %c0_1] : memref<1x8x64xf32, #tpu.memory_space<vmem>>, vector<1x8x64xf32>
    %1 = vector.shape_cast %0 : vector<1x8x64xf32> to vector<8x64xf32>
    %cst = arith.constant dense<0.000000e+00> : vector<8xf32>
    %2 = vector.multi_reduction <add>, %1, %cst [1] : vector<8x64xf32> to vector<8xf32>
    %3 = vector.shape_cast %2 : vector<8xf32> to vector<8x1xf32>
    %cst_2 = arith.constant 6.400000e+01 : f32
    %4 = vector.broadcast %cst_2 : f32 to vector<8x1xf32>
    %5 = arith.divf %3, %4 : vector<8x1xf32>
    %6 = vector.broadcast %5 : vector<8x1xf32> to vector<8x64xf32>
    %7 = arith.subf %1, %6 : vector<8x64xf32>
    %8 = arith.mulf %7, %7 : vector<8x64xf32>
    %cst_3 = arith.constant dense<0.000000e+00> : vector<8xf32>
    %9 = vector.multi_reduction <add>, %8, %cst_3 [1] : vector<8x64xf32> to vector<8xf32>
    %10 = vector.shape_cast %9 : vector<8xf32> to vector<8x1xf32>
    %cst_4 = arith.constant 6.400000e+01 : f32
    %11 = vector.broadcast %cst_4 : f32 to vector<8x1xf32>
    %12 = arith.divf %10, %11 : vector<8x1xf32>
    %13 = vector.broadcast %5 : vector<8x1xf32> to vector<8x64xf32>
    %14 = arith.subf %1, %13 : vector<8x64xf32>
    %cst_5 = arith.constant 9.99999974E-6 : f32
    %15 = vector.broadcast %cst_5 : f32 to vector<8x1xf32>
    %16 = arith.addf %12, %15 : vector<8x1xf32>
    %17 = math.rsqrt %16 : vector<8x1xf32>
    %18 = vector.broadcast %17 : vector<8x1xf32> to vector<8x64xf32>
    %19 = arith.mulf %14, %18 : vector<8x64xf32>
    %c0_6 = arith.constant 0 : index
    %c0_7 = arith.constant 0 : index
    %20 = vector.load %arg2[%c0_6, %c0_7] : memref<1x64xf32, #tpu.memory_space<vmem>>, vector<1x64xf32>
    %21 = vector.broadcast %20 : vector<1x64xf32> to vector<8x64xf32>
    %22 = arith.mulf %19, %21 : vector<8x64xf32>
    %c0_8 = arith.constant 0 : index
    %c0_9 = arith.constant 0 : index
    %23 = vector.load %arg3[%c0_8, %c0_9] : memref<1x64xf32, #tpu.memory_space<vmem>>, vector<1x64xf32>
    %24 = vector.broadcast %23 : vector<1x64xf32> to vector<8x64xf32>
    %25 = arith.addf %22, %24 : vector<8x64xf32>
    %26 = arith.truncf %25 : vector<8x64xf32> to vector<8x64xbf16>
    %c0_10 = arith.constant 0 : index
    %c0_11 = arith.constant 0 : index
    %27 = vector.load %arg4[%c0_10, %c0_11] : memref<64x64xbf16, #tpu.memory_space<vmem>>, vector<64x64xbf16>
    %cst_12 = arith.constant dense<0.000000e+00> : vector<8x64xf32>
    %28 = tpu.matmul %26, %27, %cst_12 {dimension_numbers = #tpu.dot_dimension_numbers<[1], [0], [0], [1], [0, 0, 1, 1], [], []>} : vector<8x64xbf16>, vector<64x64xbf16>, vector<8x64xf32> -> vector<8x64xf32>
    %c0_13 = arith.constant 0 : index
    %c0_14 = arith.constant 0 : index
    %29 = vector.load %arg5[%c0_13, %c0_14] : memref<1x64xf32, #tpu.memory_space<vmem>>, vector<1x64xf32>
    %30 = vector.broadcast %29 : vector<1x64xf32> to vector<8x64xf32>
    %31 = arith.addf %28, %30 : vector<8x64xf32>
    %c0_15 = arith.constant 0 : index
    %c0_16 = arith.constant 0 : index
    %32 = vector.load %arg6[%c0_15, %c0_16] : memref<64x64xbf16, #tpu.memory_space<vmem>>, vector<64x64xbf16>
    %cst_17 = arith.constant dense<0.000000e+00> : vector<8x64xf32>
    %33 = tpu.matmul %26, %32, %cst_17 {dimension_numbers = #tpu.dot_dimension_numbers<[1], [0], [0], [1], [0, 0, 1, 1], [], []>} : vector<8x64xbf16>, vector<64x64xbf16>, vector<8x64xf32> -> vector<8x64xf32>
    %c0_18 = arith.constant 0 : index
    %c0_19 = arith.constant 0 : index
    %34 = vector.load %arg7[%c0_18, %c0_19] : memref<1x64xf32, #tpu.memory_space<vmem>>, vector<1x64xf32>
    %35 = vector.broadcast %34 : vector<1x64xf32> to vector<8x64xf32>
    %36 = arith.addf %33, %35 : vector<8x64xf32>
    %c0_20 = arith.constant 0 : index
    %c0_21 = arith.constant 0 : index
    %37 = vector.load %arg8[%c0_20, %c0_21] : memref<64x64xbf16, #tpu.memory_space<vmem>>, vector<64x64xbf16>
    %cst_22 = arith.constant dense<0.000000e+00> : vector<8x64xf32>
    %38 = tpu.matmul %26, %37, %cst_22 {dimension_numbers = #tpu.dot_dimension_numbers<[1], [0], [0], [1], [0, 0, 1, 1], [], []>} : vector<8x64xbf16>, vector<64x64xbf16>, vector<8x64xf32> -> vector<8x64xf32>
    %c0_23 = arith.constant 0 : index
    %c0_24 = arith.constant 0 : index
    %39 = vector.load %arg9[%c0_23, %c0_24] : memref<1x64xf32, #tpu.memory_space<vmem>>, vector<1x64xf32>
    %40 = vector.broadcast %39 : vector<1x64xf32> to vector<8x64xf32>
    %41 = arith.addf %38, %40 : vector<8x64xf32>
    %42 = vector.extract_strided_slice %31 {offsets = [0, 0], sizes = [8, 16], strides = [1, 1]} : vector<8x64xf32> to vector<8x16xf32>
    %cst_25 = arith.constant 2.500000e-01 : f32
    %43 = vector.broadcast %cst_25 : f32 to vector<8x16xf32>
    %44 = arith.mulf %42, %43 : vector<8x16xf32>
    %45 = arith.truncf %44 : vector<8x16xf32> to vector<8x16xbf16>
    %46 = vector.extract_strided_slice %36 {offsets = [0, 0], sizes = [8, 16], strides = [1, 1]} : vector<8x64xf32> to vector<8x16xf32>
    %47 = arith.truncf %46 : vector<8x16xf32> to vector<8x16xbf16>
    %48 = vector.extract_strided_slice %41 {offsets = [0, 0], sizes = [8, 16], strides = [1, 1]} : vector<8x64xf32> to vector<8x16xf32>
    %49 = arith.truncf %48 : vector<8x16xf32> to vector<8x16xbf16>
    %cst_26 = arith.constant dense<0.000000e+00> : vector<8x8xf32>
    %50 = tpu.matmul %45, %47, %cst_26 {dimension_numbers = #tpu.dot_dimension_numbers<[1], [1], [0], [0], [0, 0, 1, 0], [], []>} : vector<8x16xbf16>, vector<8x16xbf16>, vector<8x8xf32> -> vector<8x8xf32>
    %cst_27 = arith.constant dense<0xFF800000> : vector<8xf32>
    %51 = vector.multi_reduction <maximumf>, %50, %cst_27 [1] : vector<8x8xf32> to vector<8xf32>
    %cst_28 = arith.constant 0xFF800000 : f32
    %52 = vector.broadcast %cst_28 : f32 to vector<8xf32>
    %53 = arith.maximumf %52, %51 : vector<8xf32>
    %54 = vector.shape_cast %53 : vector<8xf32> to vector<8x1xf32>
    %55 = vector.broadcast %54 : vector<8x1xf32> to vector<8x8xf32>
    %56 = arith.subf %50, %55 : vector<8x8xf32>
    %57 = math.exp %56 : vector<8x8xf32>
    %cst_29 = arith.constant dense<0.000000e+00> : vector<8xf32>
    %58 = vector.multi_reduction <add>, %57, %cst_29 [1] : vector<8x8xf32> to vector<8xf32>
    %59 = vector.shape_cast %58 : vector<8xf32> to vector<8x1xf32>
    %60 = vector.broadcast %59 : vector<8x1xf32> to vector<8x8xf32>
    %61 = arith.divf %57, %60 : vector<8x8xf32>
    %62 = arith.truncf %61 : vector<8x8xf32> to vector<8x8xbf16>
    %cst_30 = arith.constant dense<0.000000e+00> : vector<8x16xf32>
    %63 = tpu.matmul %62, %49, %cst_30 {dimension_numbers = #tpu.dot_dimension_numbers<[1], [0], [0], [1], [0, 0, 1, 1], [], []>} : vector<8x8xbf16>, vector<8x16xbf16>, vector<8x16xf32> -> vector<8x16xf32>
    %64 = vector.extract_strided_slice %31 {offsets = [0, 16], sizes = [8, 16], strides = [1, 1]} : vector<8x64xf32> to vector<8x16xf32>
    %cst_31 = arith.constant 2.500000e-01 : f32
    %65 = vector.broadcast %cst_31 : f32 to vector<8x16xf32>
    %66 = arith.mulf %64, %65 : vector<8x16xf32>
    %67 = arith.truncf %66 : vector<8x16xf32> to vector<8x16xbf16>
    %68 = vector.extract_strided_slice %36 {offsets = [0, 16], sizes = [8, 16], strides = [1, 1]} : vector<8x64xf32> to vector<8x16xf32>
    %69 = arith.truncf %68 : vector<8x16xf32> to vector<8x16xbf16>
    %70 = vector.extract_strided_slice %41 {offsets = [0, 16], sizes = [8, 16], strides = [1, 1]} : vector<8x64xf32> to vector<8x16xf32>
    %71 = arith.truncf %70 : vector<8x16xf32> to vector<8x16xbf16>
    %cst_32 = arith.constant dense<0.000000e+00> : vector<8x8xf32>
    %72 = tpu.matmul %67, %69, %cst_32 {dimension_numbers = #tpu.dot_dimension_numbers<[1], [1], [0], [0], [0, 0, 1, 0], [], []>} : vector<8x16xbf16>, vector<8x16xbf16>, vector<8x8xf32> -> vector<8x8xf32>
    %cst_33 = arith.constant dense<0xFF800000> : vector<8xf32>
    %73 = vector.multi_reduction <maximumf>, %72, %cst_33 [1] : vector<8x8xf32> to vector<8xf32>
    %cst_34 = arith.constant 0xFF800000 : f32
    %74 = vector.broadcast %cst_34 : f32 to vector<8xf32>
    %75 = arith.maximumf %74, %73 : vector<8xf32>
    %76 = vector.shape_cast %75 : vector<8xf32> to vector<8x1xf32>
    %77 = vector.broadcast %76 : vector<8x1xf32> to vector<8x8xf32>
    %78 = arith.subf %72, %77 : vector<8x8xf32>
    %79 = math.exp %78 : vector<8x8xf32>
    %cst_35 = arith.constant dense<0.000000e+00> : vector<8xf32>
    %80 = vector.multi_reduction <add>, %79, %cst_35 [1] : vector<8x8xf32> to vector<8xf32>
    %81 = vector.shape_cast %80 : vector<8xf32> to vector<8x1xf32>
    %82 = vector.broadcast %81 : vector<8x1xf32> to vector<8x8xf32>
    %83 = arith.divf %79, %82 : vector<8x8xf32>
    %84 = arith.truncf %83 : vector<8x8xf32> to vector<8x8xbf16>
    %cst_36 = arith.constant dense<0.000000e+00> : vector<8x16xf32>
    %85 = tpu.matmul %84, %71, %cst_36 {dimension_numbers = #tpu.dot_dimension_numbers<[1], [0], [0], [1], [0, 0, 1, 1], [], []>} : vector<8x8xbf16>, vector<8x16xbf16>, vector<8x16xf32> -> vector<8x16xf32>
    %86 = vector.extract_strided_slice %31 {offsets = [0, 32], sizes = [8, 16], strides = [1, 1]} : vector<8x64xf32> to vector<8x16xf32>
    %cst_37 = arith.constant 2.500000e-01 : f32
    %87 = vector.broadcast %cst_37 : f32 to vector<8x16xf32>
    %88 = arith.mulf %86, %87 : vector<8x16xf32>
    %89 = arith.truncf %88 : vector<8x16xf32> to vector<8x16xbf16>
    %90 = vector.extract_strided_slice %36 {offsets = [0, 32], sizes = [8, 16], strides = [1, 1]} : vector<8x64xf32> to vector<8x16xf32>
    %91 = arith.truncf %90 : vector<8x16xf32> to vector<8x16xbf16>
    %92 = vector.extract_strided_slice %41 {offsets = [0, 32], sizes = [8, 16], strides = [1, 1]} : vector<8x64xf32> to vector<8x16xf32>
    %93 = arith.truncf %92 : vector<8x16xf32> to vector<8x16xbf16>
    %cst_38 = arith.constant dense<0.000000e+00> : vector<8x8xf32>
    %94 = tpu.matmul %89, %91, %cst_38 {dimension_numbers = #tpu.dot_dimension_numbers<[1], [1], [0], [0], [0, 0, 1, 0], [], []>} : vector<8x16xbf16>, vector<8x16xbf16>, vector<8x8xf32> -> vector<8x8xf32>
    %cst_39 = arith.constant dense<0xFF800000> : vector<8xf32>
    %95 = vector.multi_reduction <maximumf>, %94, %cst_39 [1] : vector<8x8xf32> to vector<8xf32>
    %cst_40 = arith.constant 0xFF800000 : f32
    %96 = vector.broadcast %cst_40 : f32 to vector<8xf32>
    %97 = arith.maximumf %96, %95 : vector<8xf32>
    %98 = vector.shape_cast %97 : vector<8xf32> to vector<8x1xf32>
    %99 = vector.broadcast %98 : vector<8x1xf32> to vector<8x8xf32>
    %100 = arith.subf %94, %99 : vector<8x8xf32>
    %101 = math.exp %100 : vector<8x8xf32>
    %cst_41 = arith.constant dense<0.000000e+00> : vector<8xf32>
    %102 = vector.multi_reduction <add>, %101, %cst_41 [1] : vector<8x8xf32> to vector<8xf32>
    %103 = vector.shape_cast %102 : vector<8xf32> to vector<8x1xf32>
    %104 = vector.broadcast %103 : vector<8x1xf32> to vector<8x8xf32>
    %105 = arith.divf %101, %104 : vector<8x8xf32>
    %106 = arith.truncf %105 : vector<8x8xf32> to vector<8x8xbf16>
    %cst_42 = arith.constant dense<0.000000e+00> : vector<8x16xf32>
    %107 = tpu.matmul %106, %93, %cst_42 {dimension_numbers = #tpu.dot_dimension_numbers<[1], [0], [0], [1], [0, 0, 1, 1], [], []>} : vector<8x8xbf16>, vector<8x16xbf16>, vector<8x16xf32> -> vector<8x16xf32>
    %108 = vector.extract_strided_slice %31 {offsets = [0, 48], sizes = [8, 16], strides = [1, 1]} : vector<8x64xf32> to vector<8x16xf32>
    %cst_43 = arith.constant 2.500000e-01 : f32
    %109 = vector.broadcast %cst_43 : f32 to vector<8x16xf32>
    %110 = arith.mulf %108, %109 : vector<8x16xf32>
    %111 = arith.truncf %110 : vector<8x16xf32> to vector<8x16xbf16>
    %112 = vector.extract_strided_slice %36 {offsets = [0, 48], sizes = [8, 16], strides = [1, 1]} : vector<8x64xf32> to vector<8x16xf32>
    %113 = arith.truncf %112 : vector<8x16xf32> to vector<8x16xbf16>
    %114 = vector.extract_strided_slice %41 {offsets = [0, 48], sizes = [8, 16], strides = [1, 1]} : vector<8x64xf32> to vector<8x16xf32>
    %115 = arith.truncf %114 : vector<8x16xf32> to vector<8x16xbf16>
    %cst_44 = arith.constant dense<0.000000e+00> : vector<8x8xf32>
    %116 = tpu.matmul %111, %113, %cst_44 {dimension_numbers = #tpu.dot_dimension_numbers<[1], [1], [0], [0], [0, 0, 1, 0], [], []>} : vector<8x16xbf16>, vector<8x16xbf16>, vector<8x8xf32> -> vector<8x8xf32>
    %cst_45 = arith.constant dense<0xFF800000> : vector<8xf32>
    %117 = vector.multi_reduction <maximumf>, %116, %cst_45 [1] : vector<8x8xf32> to vector<8xf32>
    %cst_46 = arith.constant 0xFF800000 : f32
    %118 = vector.broadcast %cst_46 : f32 to vector<8xf32>
    %119 = arith.maximumf %118, %117 : vector<8xf32>
    %120 = vector.shape_cast %119 : vector<8xf32> to vector<8x1xf32>
    %121 = vector.broadcast %120 : vector<8x1xf32> to vector<8x8xf32>
    %122 = arith.subf %116, %121 : vector<8x8xf32>
    %123 = math.exp %122 : vector<8x8xf32>
    %cst_47 = arith.constant dense<0.000000e+00> : vector<8xf32>
    %124 = vector.multi_reduction <add>, %123, %cst_47 [1] : vector<8x8xf32> to vector<8xf32>
    %125 = vector.shape_cast %124 : vector<8xf32> to vector<8x1xf32>
    %126 = vector.broadcast %125 : vector<8x1xf32> to vector<8x8xf32>
    %127 = arith.divf %123, %126 : vector<8x8xf32>
    %128 = arith.truncf %127 : vector<8x8xf32> to vector<8x8xbf16>
    %cst_48 = arith.constant dense<0.000000e+00> : vector<8x16xf32>
    %129 = tpu.matmul %128, %115, %cst_48 {dimension_numbers = #tpu.dot_dimension_numbers<[1], [0], [0], [1], [0, 0, 1, 1], [], []>} : vector<8x8xbf16>, vector<8x16xbf16>, vector<8x16xf32> -> vector<8x16xf32>
    %130 = tpu.concatenate %63, %85, %107, %129 in 1 : vector<8x16xf32>, vector<8x16xf32>, vector<8x16xf32>, vector<8x16xf32> -> vector<8x64xf32>
    %131 = arith.truncf %130 : vector<8x64xf32> to vector<8x64xbf16>
    %c0_49 = arith.constant 0 : index
    %c0_50 = arith.constant 0 : index
    %132 = vector.load %arg10[%c0_49, %c0_50] : memref<64x64xbf16, #tpu.memory_space<vmem>>, vector<64x64xbf16>
    %cst_51 = arith.constant dense<0.000000e+00> : vector<8x64xf32>
    %133 = tpu.matmul %131, %132, %cst_51 {dimension_numbers = #tpu.dot_dimension_numbers<[1], [0], [0], [1], [0, 0, 1, 1], [], []>} : vector<8x64xbf16>, vector<64x64xbf16>, vector<8x64xf32> -> vector<8x64xf32>
    %c0_52 = arith.constant 0 : index
    %c0_53 = arith.constant 0 : index
    %134 = vector.load %arg11[%c0_52, %c0_53] : memref<1x64xf32, #tpu.memory_space<vmem>>, vector<1x64xf32>
    %135 = vector.broadcast %134 : vector<1x64xf32> to vector<8x64xf32>
    %136 = arith.addf %133, %135 : vector<8x64xf32>
    %137 = arith.addf %1, %136 : vector<8x64xf32>
    %cst_54 = arith.constant dense<0.000000e+00> : vector<8xf32>
    %138 = vector.multi_reduction <add>, %137, %cst_54 [1] : vector<8x64xf32> to vector<8xf32>
    %139 = vector.shape_cast %138 : vector<8xf32> to vector<8x1xf32>
    %cst_55 = arith.constant 6.400000e+01 : f32
    %140 = vector.broadcast %cst_55 : f32 to vector<8x1xf32>
    %141 = arith.divf %139, %140 : vector<8x1xf32>
    %142 = vector.broadcast %141 : vector<8x1xf32> to vector<8x64xf32>
    %143 = arith.subf %137, %142 : vector<8x64xf32>
    %144 = arith.mulf %143, %143 : vector<8x64xf32>
    %cst_56 = arith.constant dense<0.000000e+00> : vector<8xf32>
    %145 = vector.multi_reduction <add>, %144, %cst_56 [1] : vector<8x64xf32> to vector<8xf32>
    %146 = vector.shape_cast %145 : vector<8xf32> to vector<8x1xf32>
    %cst_57 = arith.constant 6.400000e+01 : f32
    %147 = vector.broadcast %cst_57 : f32 to vector<8x1xf32>
    %148 = arith.divf %146, %147 : vector<8x1xf32>
    %149 = vector.broadcast %141 : vector<8x1xf32> to vector<8x64xf32>
    %150 = arith.subf %137, %149 : vector<8x64xf32>
    %cst_58 = arith.constant 9.99999974E-6 : f32
    %151 = vector.broadcast %cst_58 : f32 to vector<8x1xf32>
    %152 = arith.addf %148, %151 : vector<8x1xf32>
    %153 = math.rsqrt %152 : vector<8x1xf32>
    %154 = vector.broadcast %153 : vector<8x1xf32> to vector<8x64xf32>
    %155 = arith.mulf %150, %154 : vector<8x64xf32>
    %c0_59 = arith.constant 0 : index
    %c0_60 = arith.constant 0 : index
    %156 = vector.load %arg12[%c0_59, %c0_60] : memref<1x64xf32, #tpu.memory_space<vmem>>, vector<1x64xf32>
    %157 = vector.broadcast %156 : vector<1x64xf32> to vector<8x64xf32>
    %158 = arith.mulf %155, %157 : vector<8x64xf32>
    %c0_61 = arith.constant 0 : index
    %c0_62 = arith.constant 0 : index
    %159 = vector.load %arg13[%c0_61, %c0_62] : memref<1x64xf32, #tpu.memory_space<vmem>>, vector<1x64xf32>
    %160 = vector.broadcast %159 : vector<1x64xf32> to vector<8x64xf32>
    %161 = arith.addf %158, %160 : vector<8x64xf32>
    %162 = arith.truncf %161 : vector<8x64xf32> to vector<8x64xbf16>
    %c0_63 = arith.constant 0 : index
    %c0_64 = arith.constant 0 : index
    %163 = vector.load %arg14[%c0_63, %c0_64] : memref<64x256xbf16, #tpu.memory_space<vmem>>, vector<64x256xbf16>
    %cst_65 = arith.constant dense<0.000000e+00> : vector<8x256xf32>
    %164 = tpu.matmul %162, %163, %cst_65 {dimension_numbers = #tpu.dot_dimension_numbers<[1], [0], [0], [1], [0, 0, 1, 1], [], []>} : vector<8x64xbf16>, vector<64x256xbf16>, vector<8x256xf32> -> vector<8x256xf32>
    %c0_66 = arith.constant 0 : index
    %c0_67 = arith.constant 0 : index
    %165 = vector.load %arg15[%c0_66, %c0_67] : memref<1x256xf32, #tpu.memory_space<vmem>>, vector<1x256xf32>
    %166 = vector.broadcast %165 : vector<1x256xf32> to vector<8x256xf32>
    %167 = arith.addf %164, %166 : vector<8x256xf32>
    %cst_68 = arith.constant 1.702000e+00 : f32
    %168 = vector.broadcast %cst_68 : f32 to vector<8x256xf32>
    %169 = arith.mulf %168, %167 : vector<8x256xf32>
    %170 = arith.negf %169 : vector<8x256xf32>
    %171 = math.exp %170 : vector<8x256xf32>
    %cst_69 = arith.constant 1.000000e+00 : f32
    %172 = vector.broadcast %cst_69 : f32 to vector<8x256xf32>
    %173 = arith.addf %172, %171 : vector<8x256xf32>
    %174 = arith.divf %172, %173 : vector<8x256xf32>
    %175 = arith.mulf %167, %174 : vector<8x256xf32>
    %176 = arith.truncf %175 : vector<8x256xf32> to vector<8x256xbf16>
    %c0_70 = arith.constant 0 : index
    %c0_71 = arith.constant 0 : index
    %177 = vector.load %arg16[%c0_70, %c0_71] : memref<256x64xbf16, #tpu.memory_space<vmem>>, vector<256x64xbf16>
    %cst_72 = arith.constant dense<0.000000e+00> : vector<8x64xf32>
    %178 = tpu.matmul %176, %177, %cst_72 {dimension_numbers = #tpu.dot_dimension_numbers<[1], [0], [0], [1], [0, 0, 1, 1], [], []>} : vector<8x256xbf16>, vector<256x64xbf16>, vector<8x64xf32> -> vector<8x64xf32>
    %c0_73 = arith.constant 0 : index
    %c0_74 = arith.constant 0 : index
    %179 = vector.load %arg17[%c0_73, %c0_74] : memref<1x64xf32, #tpu.memory_space<vmem>>, vector<1x64xf32>
    %180 = vector.broadcast %179 : vector<1x64xf32> to vector<8x64xf32>
    %181 = arith.addf %178, %180 : vector<8x64xf32>
    %182 = arith.addf %137, %181 : vector<8x64xf32>
    %c0_75 = arith.constant 0 : index
    %c0_76 = arith.constant 0 : index
    %c0_77 = arith.constant 0 : index
    %183 = vector.load %arg18[%c0_75, %c0_76, %c0_77] : memref<1x8x64xf32, #tpu.memory_space<vmem>>, vector<1x8x64xf32>
    %184 = vector.shape_cast %183 : vector<1x8x64xf32> to vector<8x64xf32>
    %185 = vector.shape_cast %182 : vector<8x64xf32> to vector<1x8x64xf32>
    tpu.vector_store %arg18[%c0_75, %c0_76, %c0_77], %185 {strides = array<i32>} : memref<1x8x64xf32, #tpu.memory_space<vmem>>, vector<1x8x64xf32>,
    return
  }
  func.func @transform_0(%arg0: i32) -> (i32, i32, i32) {
    %c0_i32 = arith.constant 0 : i32
    %c0_i32_0 = arith.constant 0 : i32
    %c0_i32_1 = arith.constant 0 : i32
    return %arg0, %c0_i32, %c0_i32_0 : i32, i32, i32
  }
  func.func @transform_1(%arg0: i32) -> (i32, i32) {
    %c0_i32 = arith.constant 0 : i32
    %c0_i32_0 = arith.constant 0 : i32
    %c0_i32_1 = arith.constant 0 : i32
    return %c0_i32, %c0_i32_0 : i32, i32
  }
  func.func @transform_2(%arg0: i32) -> (i32, i32) {
    %c0_i32 = arith.constant 0 : i32
    %c0_i32_0 = arith.constant 0 : i32
    %c0_i32_1 = arith.constant 0 : i32
    return %c0_i32, %c0_i32_0 : i32, i32
  }
  func.func @transform_3(%arg0: i32) -> (i32, i32) {
    %c0_i32 = arith.constant 0 : i32
    %c0_i32_0 = arith.constant 0 : i32
    %c0_i32_1 = arith.constant 0 : i32
    return %c0_i32, %c0_i32_0 : i32, i32
  }
  func.func @transform_4(%arg0: i32) -> (i32, i32) {
    %c0_i32 = arith.constant 0 : i32
    %c0_i32_0 = arith.constant 0 : i32
    %c0_i32_1 = arith.constant 0 : i32
    return %c0_i32, %c0_i32_0 : i32, i32
  }
  func.func @transform_5(%arg0: i32) -> (i32, i32) {
    %c0_i32 = arith.constant 0 : i32
    %c0_i32_0 = arith.constant 0 : i32
    %c0_i32_1 = arith.constant 0 : i32
    return %c0_i32, %c0_i32_0 : i32, i32
  }
  func.func @transform_6(%arg0: i32) -> (i32, i32) {
    %c0_i32 = arith.constant 0 : i32
    %c0_i32_0 = arith.constant 0 : i32
    %c0_i32_1 = arith.constant 0 : i32
    return %c0_i32, %c0_i32_0 : i32, i32
  }
  func.func @transform_7(%arg0: i32) -> (i32, i32) {
    %c0_i32 = arith.constant 0 : i32
    %c0_i32_0 = arith.constant 0 : i32
    %c0_i32_1 = arith.constant 0 : i32
    return %c0_i32, %c0_i32_0 : i32, i32
  }
  func.func @transform_8(%arg0: i32) -> (i32, i32) {
    %c0_i32 = arith.constant 0 : i32
    %c0_i32_0 = arith.constant 0 : i32
    %c0_i32_1 = arith.constant 0 : i32
    return %c0_i32, %c0_i32_0 : i32, i32
  }
  func.func @transform_9(%arg0: i32) -> (i32, i32) {
    %c0_i32 = arith.constant 0 : i32
    %c0_i32_0 = arith.constant 0 : i32
    %c0_i32_1 = arith.constant 0 : i32
    return %c0_i32, %c0_i32_0 : i32, i32
  }
  func.func @transform_10(%arg0: i32) -> (i32, i32) {
    %c0_i32 = arith.constant 0 : i32
    %c0_i32_0 = arith.constant 0 : i32
    %c0_i32_1 = arith.constant 0 : i32
    return %c0_i32, %c0_i32_0 : i32, i32
  }
  func.func @transform_11(%arg0: i32) -> (i32, i32) {
    %c0_i32 = arith.constant 0 : i32
    %c0_i32_0 = arith.constant 0 : i32
    %c0_i32_1 = arith.constant 0 : i32
    return %c0_i32, %c0_i32_0 : i32, i32
  }
  func.func @transform_12(%arg0: i32) -> (i32, i32) {
    %c0_i32 = arith.constant 0 : i32
    %c0_i32_0 = arith.constant 0 : i32
    %c0_i32_1 = arith.constant 0 : i32
    return %c0_i32, %c0_i32_0 : i32, i32
  }
  func.func @transform_13(%arg0: i32) -> (i32, i32) {
    %c0_i32 = arith.constant 0 : i32
    %c0_i32_0 = arith.constant 0 : i32
    %c0_i32_1 = arith.constant 0 : i32
    return %c0_i32, %c0_i32_0 : i32, i32
  }
  func.func @transform_14(%arg0: i32) -> (i32, i32) {
    %c0_i32 = arith.constant 0 : i32
    %c0_i32_0 = arith.constant 0 : i32
    %c0_i32_1 = arith.constant 0 : i32
    return %c0_i32, %c0_i32_0 : i32, i32
  }
  func.func @transform_15(%arg0: i32) -> (i32, i32) {
    %c0_i32 = arith.constant 0 : i32
    %c0_i32_0 = arith.constant 0 : i32
    %c0_i32_1 = arith.constant 0 : i32
    return %c0_i32, %c0_i32_0 : i32, i32
  }
  func.func @transform_16(%arg0: i32) -> (i32, i32) {
    %c0_i32 = arith.constant 0 : i32
    %c0_i32_0 = arith.constant 0 : i32
    %c0_i32_1 = arith.constant 0 : i32
    return %c0_i32, %c0_i32_0 : i32, i32
  }
  func.func @transform_17(%arg0: i32) -> (i32, i32, i32) {
    %c0_i32 = arith.constant 0 : i32
    %c0_i32_0 = arith.constant 0 : i32
    %c0_i32_1 = arith.constant 0 : i32
    return %arg0, %c0_i32, %c0_i32_0 : i32, i32, i32
  }
}

</mosaic_0001>

<llo_original>
// kernel: transformer_forward.3
$region0: #{transformer_forward.3}
  #allocation0 [shape = 'u32[]', space=smem, size = 0x4, offset = 0x4, fixed_abs, tag = 'smem constant byte address 0x4 - core index']
  #allocation1 [shape = 'u32[144,128]{1,0:T(1,128)}', space=vmem, size = 0x12000, scoped, tag = 'internal scratch']
  %s0 = inlined_call_operand.vmem [shape: f32[2,8,64], index: 0, kind: input, shape index: {}]
  %s1 = inlined_call_operand.vmem [shape: f32[1,64], index: 1, kind: input, shape index: {}]
  %s2 = inlined_call_operand.vmem [shape: f32[1,64], index: 2, kind: input, shape index: {}]
  %s3 = inlined_call_operand.vmem [shape: bf16[64,64], index: 3, kind: input, shape index: {}]
  %s4 = inlined_call_operand.vmem [shape: f32[1,64], index: 4, kind: input, shape index: {}]
  %s5 = inlined_call_operand.vmem [shape: bf16[64,64], index: 5, kind: input, shape index: {}]
  %s6 = inlined_call_operand.vmem [shape: f32[1,64], index: 6, kind: input, shape index: {}]
  %s7 = inlined_call_operand.vmem [shape: bf16[64,64], index: 7, kind: input, shape index: {}]
  %s8 = inlined_call_operand.vmem [shape: f32[1,64], index: 8, kind: input, shape index: {}]
  %s9 = inlined_call_operand.vmem [shape: bf16[64,64], index: 9, kind: input, shape index: {}]
  %s10 = inlined_call_operand.vmem [shape: f32[1,64], index: 10, kind: input, shape index: {}]
  %s11 = inlined_call_operand.vmem [shape: f32[1,64], index: 11, kind: input, shape index: {}]
  %s12 = inlined_call_operand.vmem [shape: f32[1,64], index: 12, kind: input, shape index: {}]
  %s13 = inlined_call_operand.vmem [shape: bf16[64,256], index: 13, kind: input, shape index: {}]
  %s14 = inlined_call_operand.vmem [shape: f32[1,256], index: 14, kind: input, shape index: {}]
  %s15 = inlined_call_operand.vmem [shape: bf16[256,64], index: 15, kind: input, shape index: {}]
  %s16 = inlined_call_operand.vmem [shape: f32[1,64], index: 16, kind: input, shape index: {}]
  %s17 = inlined_call_operand.vmem [shape: f32[2,8,64], index: 17, kind: output, shape index: {}]
  %s18 = sld [smem:[#allocation0]]
  $region101: #{transformer_forward.3} parent=0
    _
  %s20 = ssub.s32 1, %s18
  %s21 = scalar_select 0, %s20, %s18
  loop: start=0, step=1, limit=4
  $region2: #{transformer_forward.3} parent=0 // loop_pre_header
    _
  $region3: #{transformer_forward.3} parent=0 // loop_header
    %s23 = sphi 0, %s27
    %p24 = scmp.ge.s32.totalorder %s23, 4
    %s33 = sphi 0, %s35
    %s36 = sphi 0, %s33
    %s37 = sphi 0, %s36
    %s53 = sphi 0, %s37
    %s57 = sphi 0, %s57
    %s59 = sphi 0, %s57
    %s60 = sphi 0, %s59
    %s74 = sphi 0, %s60
    %s78 = sphi 0, %s78
    %s80 = sphi 0, %s78
    %s81 = sphi 0, %s80
    %s95 = sphi 0, %s81
    %s99 = sphi 0, %s99
    %s101 = sphi 0, %s99
    %s102 = sphi 0, %s101
    %s116 = sphi 0, %s102
    %s120 = sphi 0, %s120
    %s122 = sphi 0, %s120
    %s123 = sphi 0, %s122
    %s137 = sphi 0, %s123
    %s141 = sphi 0, %s141
    %s143 = sphi 0, %s141
    %s144 = sphi 0, %s143
    %s158 = sphi 0, %s144
    %s162 = sphi 0, %s162
    %s164 = sphi 0, %s162
    %s165 = sphi 0, %s164
    %s179 = sphi 0, %s165
    %s183 = sphi 0, %s183
    %s185 = sphi 0, %s183
    %s186 = sphi 0, %s185
    %s200 = sphi 0, %s186
    %s204 = sphi 0, %s204
    %s206 = sphi 0, %s204
    %s207 = sphi 0, %s206
    %s221 = sphi 0, %s207
    %s225 = sphi 0, %s225
    %s227 = sphi 0, %s225
    %s228 = sphi 0, %s227
    %s242 = sphi 0, %s228
    %s246 = sphi 0, %s246
    %s248 = sphi 0, %s246
    %s249 = sphi 0, %s248
    %s263 = sphi 0, %s249
    %s267 = sphi 0, %s267
    %s269 = sphi 0, %s267
    %s270 = sphi 0, %s269
    %s284 = sphi 0, %s270
    %s288 = sphi 0, %s288
    %s290 = sphi 0, %s288
    %s291 = sphi 0, %s290
    %s305 = sphi 0, %s291
    %s309 = sphi 0, %s309
    %s311 = sphi 0, %s309
    %s312 = sphi 0, %s311
    %s326 = sphi 0, %s312
    %s330 = sphi 0, %s330
    %s332 = sphi 0, %s330
    %s333 = sphi 0, %s332
    %s347 = sphi 0, %s333
    %s351 = sphi 0, %s351
    %s353 = sphi 0, %s351
    %s354 = sphi 0, %s353
    %s368 = sphi 0, %s354
    %s372 = sphi 0, %s372
    %s374 = sphi 0, %s372
    %s375 = sphi 0, %s374
    %s389 = sphi 0, %s375
    %s395 = sphi 0, %s397
    %s398 = sphi 0, %s395
    %s399 = sphi 0, %s398
    %s415 = sphi 0, %s399
  $region4: #{transformer_forward.3} parent=0 // loop_header_branch
    %26 = sbr.rel (%p24) target = $region8
  $region5: #{transformer_forward.3} parent=0 // loop_body
    %s28 = ssub.s32 %s23, 1
    %s29 = ssub.s32 %s23, 2
    %s30 = sadd.s32 %s23, 1
    %s31 = ssub.s32 %s23, %s30
    %p32 = scmp.eq.s32.totalorder %s31, 0
    %s34 = sadd.s32 %s33, 1
    %s35 = scalar_select %p32, %s33, %s34
    %p38 = pneg %p32
    %p39 = scmp.eq.s32.totalorder %s23, 1
    %p40 = por %p38, %p39
    %p41 = scmp.ne.s32.totalorder %s33, %s36
    %p42 = scmp.eq.s32.totalorder %s23, 0
    %p43 = por %p41, %p42
    %p44 = scmp.ne.s32.totalorder %s33, %s36
    %p45 = scmp.eq.s32.totalorder %s28, 1
    %p46 = por %p44, %p45
    %p47 = scmp.ne.s32.totalorder %s36, %s37
    %p48 = scmp.eq.s32.totalorder %s28, 0
    %p49 = por %p47, %p48
    %p50 = scmp.ne.s32.totalorder %s36, %s37
    %p51 = scmp.eq.s32.totalorder %s29, 1
    %p52 = por %p50, %p51
    %p54 = scmp.ne.s32.totalorder %s37, %s53
    %p55 = scmp.eq.s32.totalorder %s29, 0
    %p56 = por %p54, %p55
    %s58 = sadd.s32 %s57, 1
    %p61 = scmp.eq.s32.totalorder %s23, 1
    %p62 = scmp.ne.s32.totalorder %s57, %s59
    %p63 = scmp.eq.s32.totalorder %s23, 0
    %p64 = por %p62, %p63
    %p65 = scmp.ne.s32.totalorder %s57, %s59
    %p66 = scmp.eq.s32.totalorder %s28, 1
    %p67 = por %p65, %p66
    %p68 = scmp.ne.s32.totalorder %s59, %s60
    %p69 = scmp.eq.s32.totalorder %s28, 0
    %p70 = por %p68, %p69
    %p71 = scmp.ne.s32.totalorder %s59, %s60
    %p72 = scmp.eq.s32.totalorder %s29, 1
    %p73 = por %p71, %p72
    %p75 = scmp.ne.s32.totalorder %s60, %s74
    %p76 = scmp.eq.s32.totalorder %s29, 0
    %p77 = por %p75, %p76
    %s79 = sadd.s32 %s78, 1
    %p82 = scmp.eq.s32.totalorder %s23, 1
    %p83 = scmp.ne.s32.totalorder %s78, %s80
    %p84 = scmp.eq.s32.totalorder %s23, 0
    %p85 = por %p83, %p84
    %p86 = scmp.ne.s32.totalorder %s78, %s80
    %p87 = scmp.eq.s32.totalorder %s28, 1
    %p88 = por %p86, %p87
    %p89 = scmp.ne.s32.totalorder %s80, %s81
    %p90 = scmp.eq.s32.totalorder %s28, 0
    %p91 = por %p89, %p90
    %p92 = scmp.ne.s32.totalorder %s80, %s81
    %p93 = scmp.eq.s32.totalorder %s29, 1
    %p94 = por %p92, %p93
    %p96 = scmp.ne.s32.totalorder %s81, %s95
    %p97 = scmp.eq.s32.totalorder %s29, 0
    %p98 = por %p96, %p97
    %s100 = sadd.s32 %s99, 1
    %p103 = scmp.eq.s32.totalorder %s23, 1
    %p104 = scmp.ne.s32.totalorder %s99, %s101
    %p105 = scmp.eq.s32.totalorder %s23, 0
    %p106 = por %p104, %p105
    %p107 = scmp.ne.s32.totalorder %s99, %s101
    %p108 = scmp.eq.s32.totalorder %s28, 1
    %p109 = por %p107, %p108
    %p110 = scmp.ne.s32.totalorder %s101, %s102
    %p111 = scmp.eq.s32.totalorder %s28, 0
    %p112 = por %p110, %p111
    %p113 = scmp.ne.s32.totalorder %s101, %s102
    %p114 = scmp.eq.s32.totalorder %s29, 1
    %p115 = por %p113, %p114
    %p117 = scmp.ne.s32.totalorder %s102, %s116
    %p118 = scmp.eq.s32.totalorder %s29, 0
    %p119 = por %p117, %p118
    %s121 = sadd.s32 %s120, 1
    %p124 = scmp.eq.s32.totalorder %s23, 1
    %p125 = scmp.ne.s32.totalorder %s120, %s122
    %p126 = scmp.eq.s32.totalorder %s23, 0
    %p127 = por %p125, %p126
    %p128 = scmp.ne.s32.totalorder %s120, %s122
    %p129 = scmp.eq.s32.totalorder %s28, 1
    %p130 = por %p128, %p129
    %p131 = scmp.ne.s32.totalorder %s122, %s123
    %p132 = scmp.eq.s32.totalorder %s28, 0
    %p133 = por %p131, %p132
    %p134 = scmp.ne.s32.totalorder %s122, %s123
    %p135 = scmp.eq.s32.totalorder %s29, 1
    %p136 = por %p134, %p135
    %p138 = scmp.ne.s32.totalorder %s123, %s137
    %p139 = scmp.eq.s32.totalorder %s29, 0
    %p140 = por %p138, %p139
    %s142 = sadd.s32 %s141, 1
    %p145 = scmp.eq.s32.totalorder %s23, 1
    %p146 = scmp.ne.s32.totalorder %s141, %s143
    %p147 = scmp.eq.s32.totalorder %s23, 0
    %p148 = por %p146, %p147
    %p149 = scmp.ne.s32.totalorder %s141, %s143
    %p150 = scmp.eq.s32.totalorder %s28, 1
    %p151 = por %p149, %p150
    %p152 = scmp.ne.s32.totalorder %s143, %s144
    %p153 = scmp.eq.s32.totalorder %s28, 0
    %p154 = por %p152, %p153
    %p155 = scmp.ne.s32.totalorder %s143, %s144
    %p156 = scmp.eq.s32.totalorder %s29, 1
    %p157 = por %p155, %p156
    %p159 = scmp.ne.s32.totalorder %s144, %s158
    %p160 = scmp.eq.s32.totalorder %s29, 0
    %p161 = por %p159, %p160
    %s163 = sadd.s32 %s162, 1
    %p166 = scmp.eq.s32.totalorder %s23, 1
    %p167 = scmp.ne.s32.totalorder %s162, %s164
    %p168 = scmp.eq.s32.totalorder %s23, 0
    %p169 = por %p167, %p168
    %p170 = scmp.ne.s32.totalorder %s162, %s164
    %p171 = scmp.eq.s32.totalorder %s28, 1
    %p172 = por %p170, %p171
    %p173 = scmp.ne.s32.totalorder %s164, %s165
    %p174 = scmp.eq.s32.totalorder %s28, 0
    %p175 = por %p173, %p174
    %p176 = scmp.ne.s32.totalorder %s164, %s165
    %p177 = scmp.eq.s32.totalorder %s29, 1
    %p178 = por %p176, %p177
    %p180 = scmp.ne.s32.totalorder %s165, %s179
    %p181 = scmp.eq.s32.totalorder %s29, 0
    %p182 = por %p180, %p181
    %s184 = sadd.s32 %s183, 1
    %p187 = scmp.eq.s32.totalorder %s23, 1
    %p188 = scmp.ne.s32.totalorder %s183, %s185
    %p189 = scmp.eq.s32.totalorder %s23, 0
    %p190 = por %p188, %p189
    %p191 = scmp.ne.s32.totalorder %s183, %s185
    %p192 = scmp.eq.s32.totalorder %s28, 1
    %p193 = por %p191, %p192
    %p194 = scmp.ne.s32.totalorder %s185, %s186
    %p195 = scmp.eq.s32.totalorder %s28, 0
    %p196 = por %p194, %p195
    %p197 = scmp.ne.s32.totalorder %s185, %s186
    %p198 = scmp.eq.s32.totalorder %s29, 1
    %p199 = por %p197, %p198
    %p201 = scmp.ne.s32.totalorder %s186, %s200
    %p202 = scmp.eq.s32.totalorder %s29, 0
    %p203 = por %p201, %p202
    %s205 = sadd.s32 %s204, 1
    %p208 = scmp.eq.s32.totalorder %s23, 1
    %p209 = scmp.ne.s32.totalorder %s204, %s206
    %p210 = scmp.eq.s32.totalorder %s23, 0
    %p211 = por %p209, %p210
    %p212 = scmp.ne.s32.totalorder %s204, %s206
    %p213 = scmp.eq.s32.totalorder %s28, 1
    %p214 = por %p212, %p213
    %p215 = scmp.ne.s32.totalorder %s206, %s207
    %p216 = scmp.eq.s32.totalorder %s28, 0
    %p217 = por %p215, %p216
    %p218 = scmp.ne.s32.totalorder %s206, %s207
    %p219 = scmp.eq.s32.totalorder %s29, 1
    %p220 = por %p218, %p219
    %p222 = scmp.ne.s32.totalorder %s207, %s221
    %p223 = scmp.eq.s32.totalorder %s29, 0
    %p224 = por %p222, %p223
    %s226 = sadd.s32 %s225, 1
    %p229 = scmp.eq.s32.totalorder %s23, 1
    %p230 = scmp.ne.s32.totalorder %s225, %s227
    %p231 = scmp.eq.s32.totalorder %s23, 0
    %p232 = por %p230, %p231
    %p233 = scmp.ne.s32.totalorder %s225, %s227
    %p234 = scmp.eq.s32.totalorder %s28, 1
    %p235 = por %p233, %p234
    %p236 = scmp.ne.s32.totalorder %s227, %s228
    %p237 = scmp.eq.s32.totalorder %s28, 0
    %p238 = por %p236, %p237
    %p239 = scmp.ne.s32.totalorder %s227, %s228
    %p240 = scmp.eq.s32.totalorder %s29, 1
    %p241 = por %p239, %p240
    %p243 = scmp.ne.s32.totalorder %s228, %s242
    %p244 = scmp.eq.s32.totalorder %s29, 0
    %p245 = por %p243, %p244
    %s247 = sadd.s32 %s246, 1
    %p250 = scmp.eq.s32.totalorder %s23, 1
    %p251 = scmp.ne.s32.totalorder %s246, %s248
    %p252 = scmp.eq.s32.totalorder %s23, 0
    %p253 = por %p251, %p252
    %p254 = scmp.ne.s32.totalorder %s246, %s248
    %p255 = scmp.eq.s32.totalorder %s28, 1
    %p256 = por %p254, %p255
    %p257 = scmp.ne.s32.totalorder %s248, %s249
    %p258 = scmp.eq.s32.totalorder %s28, 0
    %p259 = por %p257, %p258
    %p260 = scmp.ne.s32.totalorder %s248, %s249
    %p261 = scmp.eq.s32.totalorder %s29, 1
    %p262 = por %p260, %p261
    %p264 = scmp.ne.s32.totalorder %s249, %s263
    %p265 = scmp.eq.s32.totalorder %s29, 0
    %p266 = por %p264, %p265
    %s268 = sadd.s32 %s267, 1
    %p271 = scmp.eq.s32.totalorder %s23, 1
    %p272 = scmp.ne.s32.totalorder %s267, %s269
    %p273 = scmp.eq.s32.totalorder %s23, 0
    %p274 = por %p272, %p273
    %p275 = scmp.ne.s32.totalorder %s267, %s269
    %p276 = scmp.eq.s32.totalorder %s28, 1
    %p277 = por %p275, %p276
    %p278 = scmp.ne.s32.totalorder %s269, %s270
    %p279 = scmp.eq.s32.totalorder %s28, 0
    %p280 = por %p278, %p279
    %p281 = scmp.ne.s32.totalorder %s269, %s270
    %p282 = scmp.eq.s32.totalorder %s29, 1
    %p283 = por %p281, %p282
    %p285 = scmp.ne.s32.totalorder %s270, %s284
    %p286 = scmp.eq.s32.totalorder %s29, 0
    %p287 = por %p285, %p286
    %s289 = sadd.s32 %s288, 1
    %p292 = scmp.eq.s32.totalorder %s23, 1
    %p293 = scmp.ne.s32.totalorder %s288, %s290
    %p294 = scmp.eq.s32.totalorder %s23, 0
    %p295 = por %p293, %p294
    %p296 = scmp.ne.s32.totalorder %s288, %s290
    %p297 = scmp.eq.s32.totalorder %s28, 1
    %p298 = por %p296, %p297
    %p299 = scmp.ne.s32.totalorder %s290, %s291
    %p300 = scmp.eq.s32.totalorder %s28, 0
    %p301 = por %p299, %p300
    %p302 = scmp.ne.s32.totalorder %s290, %s291
    %p303 = scmp.eq.s32.totalorder %s29, 1
    %p304 = por %p302, %p303
    %p306 = scmp.ne.s32.totalorder %s291, %s305
    %p307 = scmp.eq.s32.totalorder %s29, 0
    %p308 = por %p306, %p307
    %s310 = sadd.s32 %s309, 1
    %p313 = scmp.eq.s32.totalorder %s23, 1
    %p314 = scmp.ne.s32.totalorder %s309, %s311
    %p315 = scmp.eq.s32.totalorder %s23, 0
    %p316 = por %p314, %p315
    %p317 = scmp.ne.s32.totalorder %s309, %s311
    %p318 = scmp.eq.s32.totalorder %s28, 1
    %p319 = por %p317, %p318
    %p320 = scmp.ne.s32.totalorder %s311, %s312
    %p321 = scmp.eq.s32.totalorder %s28, 0
    %p322 = por %p320, %p321
    %p323 = scmp.ne.s32.totalorder %s311, %s312
    %p324 = scmp.eq.s32.totalorder %s29, 1
    %p325 = por %p323, %p324
    %p327 = scmp.ne.s32.totalorder %s312, %s326
    %p328 = scmp.eq.s32.totalorder %s29, 0
    %p329 = por %p327, %p328
    %s331 = sadd.s32 %s330, 1
    %p334 = scmp.eq.s32.totalorder %s23, 1
    %p335 = scmp.ne.s32.totalorder %s330, %s332
    %p336 = scmp.eq.s32.totalorder %s23, 0
    %p337 = por %p335, %p336
    %p338 = scmp.ne.s32.totalorder %s330, %s332
    %p339 = scmp.eq.s32.totalorder %s28, 1
    %p340 = por %p338, %p339
    %p341 = scmp.ne.s32.totalorder %s332, %s333
    %p342 = scmp.eq.s32.totalorder %s28, 0
    %p343 = por %p341, %p342
    %p344 = scmp.ne.s32.totalorder %s332, %s333
    %p345 = scmp.eq.s32.totalorder %s29, 1
    %p346 = por %p344, %p345
    %p348 = scmp.ne.s32.totalorder %s333, %s347
    %p349 = scmp.eq.s32.totalorder %s29, 0
    %p350 = por %p348, %p349
    %s352 = sadd.s32 %s351, 1
    %p355 = scmp.eq.s32.totalorder %s23, 1
    %p356 = scmp.ne.s32.totalorder %s351, %s353
    %p357 = scmp.eq.s32.totalorder %s23, 0
    %p358 = por %p356, %p357
    %p359 = scmp.ne.s32.totalorder %s351, %s353
    %p360 = scmp.eq.s32.totalorder %s28, 1
    %p361 = por %p359, %p360
    %p362 = scmp.ne.s32.totalorder %s353, %s354
    %p363 = scmp.eq.s32.totalorder %s28, 0
    %p364 = por %p362, %p363
    %p365 = scmp.ne.s32.totalorder %s353, %s354
    %p366 = scmp.eq.s32.totalorder %s29, 1
    %p367 = por %p365, %p366
    %p369 = scmp.ne.s32.totalorder %s354, %s368
    %p370 = scmp.eq.s32.totalorder %s29, 0
    %p371 = por %p369, %p370
    %s373 = sadd.s32 %s372, 1
    %p376 = scmp.eq.s32.totalorder %s23, 1
    %p377 = scmp.ne.s32.totalorder %s372, %s374
    %p378 = scmp.eq.s32.totalorder %s23, 0
    %p379 = por %p377, %p378
    %p380 = scmp.ne.s32.totalorder %s372, %s374
    %p381 = scmp.eq.s32.totalorder %s28, 1
    %p382 = por %p380, %p381
    %p383 = scmp.ne.s32.totalorder %s374, %s375
    %p384 = scmp.eq.s32.totalorder %s28, 0
    %p385 = por %p383, %p384
    %p386 = scmp.ne.s32.totalorder %s374, %s375
    %p387 = scmp.eq.s32.totalorder %s29, 1
    %p388 = por %p386, %p387
    %p390 = scmp.ne.s32.totalorder %s375, %s389
    %p391 = scmp.eq.s32.totalorder %s29, 0
    %p392 = por %p390, %p391
    %s393 = ssub.s32 %s23, %s30
    %p394 = scmp.eq.s32.totalorder %s393, 0
    %s396 = sadd.s32 %s395, 1
    %s397 = scalar_select %p394, %s395, %s396
    %p400 = pneg %p394
    %p401 = scmp.eq.s32.totalorder %s23, 1
    %p402 = por %p400, %p401
    %p403 = scmp.ne.s32.totalorder %s395, %s398
    %p404 = scmp.eq.s32.totalorder %s23, 0
    %p405 = por %p403, %p404
    %p406 = scmp.ne.s32.totalorder %s395, %s398
    %p407 = scmp.eq.s32.totalorder %s28, 1
    %p408 = por %p406, %p407
    %p409 = scmp.ne.s32.totalorder %s398, %s399
    %p410 = scmp.eq.s32.totalorder %s28, 0
    %p411 = por %p409, %p410
    %p412 = scmp.ne.s32.totalorder %s398, %s399
    %p413 = scmp.eq.s32.totalorder %s29, 1
    %p414 = por %p412, %p413
    %p416 = scmp.ne.s32.totalorder %s399, %s415
    %p417 = scmp.eq.s32.totalorder %s29, 0
    %p418 = por %p416, %p417
    %p419 = scmp.le.s32.totalorder 1, %s23
    %p420 = scmp.lt.s32.totalorder %s23, 3
    %p421 = pnand %p419, %p420
    %p422 = pneg %p421
    // Predicated region
    $region9: #{transformer_forward.3} parent=5 // pred_check
      _
    $region10: #{transformer_forward.3} parent=5 // pred_check_branch
      %424 = sbr.rel (%p421) target = $region12
    $region11: #{transformer_forward.3} parent=5 // pred_region
      %s425 = ssub.s32 %s23, 1
      // Predicated region
      $region13: #{transformer_forward.3} parent=11 // pred_check
        %p426 = pneg %p70
      $region14: #{transformer_forward.3} parent=11 // pred_check_branch
        %428 = sbr.rel (%p426) target = $region16
      $region15: #{transformer_forward.3} parent=11 // pred_region
        _
      $region16: #{transformer_forward.3} parent=11 // pred_fallthru
        _
      // Predicated region
      $region17: #{transformer_forward.3} parent=11 // pred_check
        %p429 = pneg %p91
      $region18: #{transformer_forward.3} parent=11 // pred_check_branch
        %431 = sbr.rel (%p429) target = $region20
      $region19: #{transformer_forward.3} parent=11 // pred_region
        _
      $region20: #{transformer_forward.3} parent=11 // pred_fallthru
        _
      // Predicated region
      $region21: #{transformer_forward.3} parent=11 // pred_check
        %p432 = pneg %p112
      $region22: #{transformer_forward.3} parent=11 // pred_check_branch
        %434 = sbr.rel (%p432) target = $region24
      $region23: #{transformer_forward.3} parent=11 // pred_region
        _
      $region24: #{transformer_forward.3} parent=11 // pred_fallthru
        _
      // Predicated region
      $region25: #{transformer_forward.3} parent=11 // pred_check
        %p435 = pneg %p133
      $region26: #{transformer_forward.3} parent=11 // pred_check_branch
        %437 = sbr.rel (%p435) target = $region28
      $region27: #{transformer_forward.3} parent=11 // pred_region
        _
      $region28: #{transformer_forward.3} parent=11 // pred_fallthru
        _
      // Predicated region
      $region29: #{transformer_forward.3} parent=11 // pred_check
        %p438 = pneg %p154
      $region30: #{transformer_forward.3} parent=11 // pred_check_branch
        %440 = sbr.rel (%p438) target = $region32
      $region31: #{transformer_forward.3} parent=11 // pred_region
        _
      $region32: #{transformer_forward.3} parent=11 // pred_fallthru
        _
      // Predicated region
      $region33: #{transformer_forward.3} parent=11 // pred_check
        %p441 = pneg %p175
      $region34: #{transformer_forward.3} parent=11 // pred_check_branch
        %443 = sbr.rel (%p441) target = $region36
      $region35: #{transformer_forward.3} parent=11 // pred_region
        _
      $region36: #{transformer_forward.3} parent=11 // pred_fallthru
        _
      // Predicated region
      $region37: #{transformer_forward.3} parent=11 // pred_check
        %p444 = pneg %p196
      $region38: #{transformer_forward.3} parent=11 // pred_check_branch
        %446 = sbr.rel (%p444) target = $region40
      $region39: #{transformer_forward.3} parent=11 // pred_region
        _
      $region40: #{transformer_forward.3} parent=11 // pred_fallthru
        _
      // Predicated region
      $region41: #{transformer_forward.3} parent=11 // pred_check
        %p447 = pneg %p217
      $region42: #{transformer_forward.3} parent=11 // pred_check_branch
        %449 = sbr.rel (%p447) target = $region44
      $region43: #{transformer_forward.3} parent=11 // pred_region
        _
      $region44: #{transformer_forward.3} parent=11 // pred_fallthru
        _
      // Predicated region
      $region45: #{transformer_forward.3} parent=11 // pred_check
        %p450 = pneg %p238
      $region46: #{transformer_forward.3} parent=11 // pred_check_branch
        %452 = sbr.rel (%p450) target = $region48
      $region47: #{transformer_forward.3} parent=11 // pred_region
        _
      $region48: #{transformer_forward.3} parent=11 // pred_fallthru
        _
      // Predicated region
      $region49: #{transformer_forward.3} parent=11 // pred_check
        %p453 = pneg %p259
      $region50: #{transformer_forward.3} parent=11 // pred_check_branch
        %455 = sbr.rel (%p453) target = $region52
      $region51: #{transformer_forward.3} parent=11 // pred_region
        _
      $region52: #{transformer_forward.3} parent=11 // pred_fallthru
        _
      // Predicated region
      $region53: #{transformer_forward.3} parent=11 // pred_check
        %p456 = pneg %p280
      $region54: #{transformer_forward.3} parent=11 // pred_check_branch
        %458 = sbr.rel (%p456) target = $region56
      $region55: #{transformer_forward.3} parent=11 // pred_region
        _
      $region56: #{transformer_forward.3} parent=11 // pred_fallthru
        _
      // Predicated region
      $region57: #{transformer_forward.3} parent=11 // pred_check
        %p459 = pneg %p301
      $region58: #{transformer_forward.3} parent=11 // pred_check_branch
        %461 = sbr.rel (%p459) target = $region60
      $region59: #{transformer_forward.3} parent=11 // pred_region
        _
      $region60: #{transformer_forward.3} parent=11 // pred_fallthru
        _
      // Predicated region
      $region61: #{transformer_forward.3} parent=11 // pred_check
        %p462 = pneg %p322
      $region62: #{transformer_forward.3} parent=11 // pred_check_branch
        %464 = sbr.rel (%p462) target = $region64
      $region63: #{transformer_forward.3} parent=11 // pred_region
        _
      $region64: #{transformer_forward.3} parent=11 // pred_fallthru
        _
      // Predicated region
      $region65: #{transformer_forward.3} parent=11 // pred_check
        %p465 = pneg %p343
      $region66: #{transformer_forward.3} parent=11 // pred_check_branch
        %467 = sbr.rel (%p465) target = $region68
      $region67: #{transformer_forward.3} parent=11 // pred_region
        _
      $region68: #{transformer_forward.3} parent=11 // pred_fallthru
        _
      // Predicated region
      $region69: #{transformer_forward.3} parent=11 // pred_check
        %p468 = pneg %p364
      $region70: #{transformer_forward.3} parent=11 // pred_check_branch
        %470 = sbr.rel (%p468) target = $region72
      $region71: #{transformer_forward.3} parent=11 // pred_region
        _
      $region72: #{transformer_forward.3} parent=11 // pred_fallthru
        _
      // Predicated region
      $region73: #{transformer_forward.3} parent=11 // pred_check
        %p471 = pneg %p385
      $region74: #{transformer_forward.3} parent=11 // pred_check_branch
        %473 = sbr.rel (%p471) target = $region76
      $region75: #{transformer_forward.3} parent=11 // pred_region
        _
      $region76: #{transformer_forward.3} parent=11 // pred_fallthru
        _
    $region12: #{transformer_forward.3} parent=5 // pred_fallthru
      _
    %p474 = scmp.lt.s32.totalorder %s23, 2
    // Predicated region
    $region77: #{transformer_forward.3} parent=5 // pred_check
      %p475 = pneg %p474
    $region78: #{transformer_forward.3} parent=5 // pred_check_branch
      %477 = sbr.rel (%p475) target = $region80
    $region79: #{transformer_forward.3} parent=5 // pred_region
      // Predicated region
      $region81: #{transformer_forward.3} parent=79 // pred_check
        %p478 = pneg %p43
      $region82: #{transformer_forward.3} parent=79 // pred_check_branch
        %480 = sbr.rel (%p478) target = $region84
      $region83: #{transformer_forward.3} parent=79 // pred_region
        %p481 = scmp.lt.s32.totalorder %s23, 1
        %s482 = scalar_select %p481, %s23, 1
        %s483 = smul.addr %s482, 8
        %s484 = scalar_lea.vmem %s0, %s483
      $region84: #{transformer_forward.3} parent=79 // pred_fallthru
        _
    $region80: #{transformer_forward.3} parent=5 // pred_fallthru
      _
    %p485 = scmp.le.s32.totalorder 1, %s23
    %p486 = scmp.lt.s32.totalorder %s23, 3
    %p487 = pnand %p485, %p486
    %p488 = pneg %p487
    // Predicated region
    $region85: #{transformer_forward.3} parent=5 // pred_check
      _
    $region86: #{transformer_forward.3} parent=5 // pred_check_branch
      %490 = sbr.rel (%p487) target = $region88
    $region87: #{transformer_forward.3} parent=5 // pred_region
      %s491 = ssub.s32 %s23, 1
      %p492 = scmp.lt.s32.totalorder %s28, 1
      %s493 = scalar_select %p492, %s28, 1
      %s494 = smul.addr %s493, 8
      %s495 = scalar_lea.vmem %s0, %s494
      %p496 = pneg %p49
      %p497 = pneg %p46
      %p498 = pneg %p70
      %p499 = pneg %p67
      %p500 = pneg %p91
      %p501 = pneg %p88
      %p502 = pneg %p112
      %p503 = pneg %p109
      %p504 = pneg %p133
      %p505 = pneg %p130
      %p506 = pneg %p154
      %p507 = pneg %p151
      %p508 = pneg %p175
      %p509 = pneg %p172
      %p510 = pneg %p196
      %p511 = pneg %p193
      %p512 = pneg %p217
      %p513 = pneg %p214
      %p514 = pneg %p238
      %p515 = pneg %p235
      %p516 = pneg %p259
      %p517 = pneg %p256
      %p518 = pneg %p280
      %p519 = pneg %p277
      %p520 = pneg %p301
      %p521 = pneg %p298
      %p522 = pneg %p322
      %p523 = pneg %p319
      %p524 = pneg %p343
      %p525 = pneg %p340
      %p526 = pneg %p364
      %p527 = pneg %p361
      %p528 = pneg %p385
      %p529 = pneg %p382
      %p530 = pneg %p411
      %p531 = pneg %p408
      %p532 = scmp.lt.s32.totalorder %s28, 1
      %s533 = scalar_select %p532, %s28, 1
      %s534 = smul.addr %s533, 8
      %s535 = scalar_lea.vmem %s17, %s534
      %p536 = scmp.lt.s32.totalorder %s28, 1
      %s537 = scalar_select %p536, %s28, 1
      %s538 = smul.addr %s537, 8
      %s539 = scalar_lea.vmem %s0, %s538
      %p540 = scmp.lt.s32.totalorder %s28, 1
      %s541 = scalar_select %p540, %s28, 1
      %s542 = smul.addr %s541, 8
      %s543 = scalar_lea.vmem %s17, %s542
      %v545 = vld [vmem:[%s539] sm:$0xff]
      %vm546 = vcmask 523264
      %v547 = vsel %vm546, %v545, 0.0
      %548 = vadd.xlane.f32.xlu0 %v547
      %v549 = vpop.xlane.xlu0 %548
      %v550 = vrcp.pop 64.0
      %v551 = vmul.f32 %v549, %v550
      %v552 = vsub.f32 %v545, %v551
      %v553 = vmul.f32 %v552, %v552
      %v554 = vsel %vm546, %v553, 0.0
      %555 = vadd.xlane.f32.xlu0 %v554
      %v556 = vpop.xlane.xlu0 %555
      %v557 = vmul.f32 %v556, %v550
      %v558 = vadd.f32 %v557, 1e-05
      %v559 = vrsqrt.pop %v558
      %v560 = vmul.f32 %v552, %v559
      %v561 = vld [vmem:[%s1] sm:$0x1]
      %v563 = vlaneseq
      %v564 = vshrl.u32 %v563, 7
      %v565 = vsub.s32 0, %v564
      %v566 = vrot.slane %v561, %v565
      %v568 = vmul.f32 %v560, %v566
      %v569 = vld [vmem:[%s2] sm:$0x1]
      %v571 = vlaneseq
      %v572 = vshrl.u32 %v571, 7
      %v573 = vsub.s32 0, %v572
      %v574 = vrot.slane %v569, %v573
      %v576 = vadd.f32 %v568, %v574
      %v577 = vpack.c.bf16 %v576, %v576
      %v578 = vld [vmem:[%s3] sm:$0xf]
      %v579 = vld [vmem:[%s3 + $0x4] sm:$0xf]
      %v580 = vld [vmem:[%s3 + $0x8] sm:$0xf]
      %v581 = vld [vmem:[%s3 + $0xc] sm:$0xf]
      %v582 = vld [vmem:[%s3 + $0x10] sm:$0xf]
      %v583 = vld [vmem:[%s3 + $0x14] sm:$0xf]
      %v584 = vld [vmem:[%s3 + $0x18] sm:$0xf]
      %v585 = vld [vmem:[%s3 + $0x1c] sm:$0xf]
      %v586 = vld [vmem:[%s4] sm:$0x1]
      %v588 = vlaneseq
      %v589 = vshrl.u32 %v588, 7
      %v590 = vsub.s32 0, %v589
      %v591 = vrot.slane %v586, %v590
      %v601 = vunpack.c.l.b16 %v578
      %v602 = vunpack.c.l.b16 %v579
      %v603 = vunpack.c.l.b16 %v580
      %v604 = vunpack.c.l.b16 %v581
      %v605 = vunpack.c.l.b16 %v582
      %v606 = vunpack.c.l.b16 %v583
      %v607 = vunpack.c.l.b16 %v584
      %v608 = vunpack.c.l.b16 %v585
      %v609 = vpack.c.b16 %v602, %v601
      %v610 = vpack.c.b16 %v604, %v603
      %v611 = vpack.c.b16 %v606, %v605
      %v612 = vpack.c.b16 %v608, %v607
      %v618 = vsel %vm546, %v577, 0
      %620 = vmatprep.subr.bf16.mxu0 0
      %621 = vmatpush1.bf16.msra.mxu0 %v609
      %622 = vmatprep.subr.bf16.mxu0 0
      %623 = vmatpush1.bf16.msra.mxu0 %v610
      %624 = vmatprep.subr.bf16.mxu0 0
      %625 = vmatpush1.bf16.msra.mxu0 %v611
      %626 = vmatprep.subr.bf16.mxu0 0
      %627 = vmatpush1.bf16.msra.mxu0 %v612
      %628 = vmatprep.subr.bf16.mxu0 0
      %629 = vmatpush1.bf16.msra.mxu0 0
      %630 = vmatprep.subr.bf16.mxu0 0
      %631 = vmatpush1.bf16.msra.mxu0 0
      %632 = vmatprep.subr.bf16.mxu0 0
      %633 = vmatpush1.bf16.msra.mxu0 0
      %634 = vmatprep.subr.bf16.mxu0 0
      %635 = vmatpush1.bf16.msra.mxu0 0
      %636 = vmatprep.subr.bf16.mxu0 0
      %637 = vmatpush1.bf16.msra.mxu0 0
      %638 = vmatprep.subr.bf16.mxu0 0
      %639 = vmatpush1.bf16.msra.mxu0 0
      %640 = vmatprep.subr.bf16.mxu0 0
      %641 = vmatpush1.bf16.msra.mxu0 0
      %642 = vmatprep.subr.bf16.mxu0 0
      %643 = vmatpush1.bf16.msra.mxu0 0
      %644 = vmatprep.subr.bf16.mxu0 0
      %645 = vmatpush1.bf16.msra.mxu0 0
      %646 = vmatprep.subr.bf16.mxu0 0
      %647 = vmatpush1.bf16.msra.mxu0 0
      %648 = vmatprep.subr.bf16.mxu0 0
      %649 = vmatpush1.bf16.msra.mxu0 0
      %650 = vmatprep.subr.bf16.mxu0 0
      %651 = vmatpush1.bf16.msra.mxu0 0
      %652 = vmatprep.mubr.bf16.mxu0 0
      %653 = vmatmul.mubr.bf16.gmra.mrb[0].mxu0 %v618
      %v654 = vpop.f32.mrb[0].mxu0
      %v655 = vadd.f32 %v591, %v654
      %v656 = vpop.f32.mrb[0].mxu0
      %v657 = vpop.f32.mrb[0].mxu0
      %v658 = vpop.f32.mrb[0].mxu0
      %659 = vdwg.mxu0
      %v660 = vld [vmem:[%s5] sm:$0xf]
      %v661 = vld [vmem:[%s5 + $0x4] sm:$0xf]
      %v662 = vld [vmem:[%s5 + $0x8] sm:$0xf]
      %v663 = vld [vmem:[%s5 + $0xc] sm:$0xf]
      %v664 = vld [vmem:[%s5 + $0x10] sm:$0xf]
      %v665 = vld [vmem:[%s5 + $0x14] sm:$0xf]
      %v666 = vld [vmem:[%s5 + $0x18] sm:$0xf]
      %v667 = vld [vmem:[%s5 + $0x1c] sm:$0xf]
      %v668 = vld [vmem:[%s6] sm:$0x1]
      %v670 = vlaneseq
      %v671 = vshrl.u32 %v670, 7
      %v672 = vsub.s32 0, %v671
      %v673 = vrot.slane %v668, %v672
      %v683 = vunpack.c.l.b16 %v660
      %v684 = vunpack.c.l.b16 %v661
      %v685 = vunpack.c.l.b16 %v662
      %v686 = vunpack.c.l.b16 %v663
      %v687 = vunpack.c.l.b16 %v664
      %v688 = vunpack.c.l.b16 %v665
      %v689 = vunpack.c.l.b16 %v666
      %v690 = vunpack.c.l.b16 %v667
      %v691 = vpack.c.b16 %v684, %v683
      %v692 = vpack.c.b16 %v686, %v685
      %v693 = vpack.c.b16 %v688, %v687
      %v694 = vpack.c.b16 %v690, %v689
      %699 = vmatprep.subr.bf16.mxu0 0
      %700 = vmatpush1.bf16.msra.mxu0 %v691
      %701 = vmatprep.subr.bf16.mxu0 0
      %702 = vmatpush1.bf16.msra.mxu0 %v692
      %703 = vmatprep.subr.bf16.mxu0 0
      %704 = vmatpush1.bf16.msra.mxu0 %v693
      %705 = vmatprep.subr.bf16.mxu0 0
      %706 = vmatpush1.bf16.msra.mxu0 %v694
      %707 = vmatprep.subr.bf16.mxu0 0
      %708 = vmatpush1.bf16.msra.mxu0 0
      %709 = vmatprep.subr.bf16.mxu0 0
      %710 = vmatpush1.bf16.msra.mxu0 0
      %711 = vmatprep.subr.bf16.mxu0 0
      %712 = vmatpush1.bf16.msra.mxu0 0
      %713 = vmatprep.subr.bf16.mxu0 0
      %714 = vmatpush1.bf16.msra.mxu0 0
      %715 = vmatprep.subr.bf16.mxu0 0
      %716 = vmatpush1.bf16.msra.mxu0 0
      %717 = vmatprep.subr.bf16.mxu0 0
      %718 = vmatpush1.bf16.msra.mxu0 0
      %719 = vmatprep.subr.bf16.mxu0 0
      %720 = vmatpush1.bf16.msra.mxu0 0
      %721 = vmatprep.subr.bf16.mxu0 0
      %722 = vmatpush1.bf16.msra.mxu0 0
      %723 = vmatprep.subr.bf16.mxu0 0
      %724 = vmatpush1.bf16.msra.mxu0 0
      %725 = vmatprep.subr.bf16.mxu0 0
      %726 = vmatpush1.bf16.msra.mxu0 0
      %727 = vmatprep.subr.bf16.mxu0 0
      %728 = vmatpush1.bf16.msra.mxu0 0
      %729 = vmatprep.subr.bf16.mxu0 0
      %730 = vmatpush1.bf16.msra.mxu0 0
      %731 = vmatprep.mubr.bf16.mxu0 0
      %732 = vmatmul.mubr.bf16.gmra.mrb[0].mxu0 %v618
      %v733 = vpop.f32.mrb[0].mxu0
      %v734 = vadd.f32 %v673, %v733
      %v735 = vpop.f32.mrb[0].mxu0
      %v736 = vpop.f32.mrb[0].mxu0
      %v737 = vpop.f32.mrb[0].mxu0
      %738 = vdwg.mxu0
      %v739 = vld [vmem:[%s7] sm:$0xf]
      %v740 = vld [vmem:[%s7 + $0x4] sm:$0xf]
      %v741 = vld [vmem:[%s7 + $0x8] sm:$0xf]
      %v742 = vld [vmem:[%s7 + $0xc] sm:$0xf]
      %v743 = vld [vmem:[%s7 + $0x10] sm:$0xf]
      %v744 = vld [vmem:[%s7 + $0x14] sm:$0xf]
      %v745 = vld [vmem:[%s7 + $0x18] sm:$0xf]
      %v746 = vld [vmem:[%s7 + $0x1c] sm:$0xf]
      %v747 = vld [vmem:[%s8] sm:$0x1]
      %v749 = vlaneseq
      %v750 = vshrl.u32 %v749, 7
      %v751 = vsub.s32 0, %v750
      %v752 = vrot.slane %v747, %v751
      %v762 = vunpack.c.l.b16 %v739
      %v763 = vunpack.c.l.b16 %v740
      %v764 = vunpack.c.l.b16 %v741
      %v765 = vunpack.c.l.b16 %v742
      %v766 = vunpack.c.l.b16 %v743
      %v767 = vunpack.c.l.b16 %v744
      %v768 = vunpack.c.l.b16 %v745
      %v769 = vunpack.c.l.b16 %v746
      %v770 = vpack.c.b16 %v763, %v762
      %v771 = vpack.c.b16 %v765, %v764
      %v772 = vpack.c.b16 %v767, %v766
      %v773 = vpack.c.b16 %v769, %v768
      %778 = vmatprep.subr.bf16.mxu0 0
      %779 = vmatpush1.bf16.msra.mxu0 %v770
      %780 = vmatprep.subr.bf16.mxu0 0
      %781 = vmatpush1.bf16.msra.mxu0 %v771
      %782 = vmatprep.subr.bf16.mxu0 0
      %783 = vmatpush1.bf16.msra.mxu0 %v772
      %784 = vmatprep.subr.bf16.mxu0 0
      %785 = vmatpush1.bf16.msra.mxu0 %v773
      %786 = vmatprep.subr.bf16.mxu0 0
      %787 = vmatpush1.bf16.msra.mxu0 0
      %788 = vmatprep.subr.bf16.mxu0 0
      %789 = vmatpush1.bf16.msra.mxu0 0
      %790 = vmatprep.subr.bf16.mxu0 0
      %791 = vmatpush1.bf16.msra.mxu0 0
      %792 = vmatprep.subr.bf16.mxu0 0
      %793 = vmatpush1.bf16.msra.mxu0 0
      %794 = vmatprep.subr.bf16.mxu0 0
      %795 = vmatpush1.bf16.msra.mxu0 0
      %796 = vmatprep.subr.bf16.mxu0 0
      %797 = vmatpush1.bf16.msra.mxu0 0
      %798 = vmatprep.subr.bf16.mxu0 0
      %799 = vmatpush1.bf16.msra.mxu0 0
      %800 = vmatprep.subr.bf16.mxu0 0
      %801 = vmatpush1.bf16.msra.mxu0 0
      %802 = vmatprep.subr.bf16.mxu0 0
      %803 = vmatpush1.bf16.msra.mxu0 0
      %804 = vmatprep.subr.bf16.mxu0 0
      %805 = vmatpush1.bf16.msra.mxu0 0
      %806 = vmatprep.subr.bf16.mxu0 0
      %807 = vmatpush1.bf16.msra.mxu0 0
      %808 = vmatprep.subr.bf16.mxu0 0
      %809 = vmatpush1.bf16.msra.mxu0 0
      %810 = vmatprep.mubr.bf16.mxu0 0
      %811 = vmatmul.mubr.bf16.gmra.mrb[0].mxu0 %v618
      %v812 = vpop.f32.mrb[0].mxu0
      %v813 = vadd.f32 %v752, %v812
      %v814 = vpop.f32.mrb[0].mxu0
      %v815 = vpop.f32.mrb[0].mxu0
      %v816 = vpop.f32.mrb[0].mxu0
      %817 = vdwg.mxu0
      %v818 = vmul.f32 %v655, 0.25
      %v819 = vpack.c.bf16 %v818, %v818
      %v820 = vpack.c.bf16 %v734, %v734
      %v821 = vpack.c.bf16 %v813, %v813
      %vm822 = vcmask 130048
      %v824 = vsel %vm822, %v819, 0
      %v827 = vsel %vm822, %v820, 0
      %829 = vmatprep.subr.bf16.mxu0 0
      %830 = vmatpush1.bf16.xpose.msra.mxu0 %v827
      %831 = vmatprep.subr.bf16.mxu0 0
      %832 = vmatpush1.bf16.xpose.msra.mxu0 0
      %833 = vmatprep.subr.bf16.mxu0 0
      %834 = vmatpush1.bf16.xpose.msra.mxu0 0
      %835 = vmatprep.subr.bf16.mxu0 0
      %836 = vmatpush1.bf16.xpose.msra.mxu0 0
      %837 = vmatprep.subr.bf16.mxu0 0
      %838 = vmatpush1.bf16.xpose.msra.mxu0 0
      %839 = vmatprep.subr.bf16.mxu0 0
      %840 = vmatpush1.bf16.xpose.msra.mxu0 0
      %841 = vmatprep.subr.bf16.mxu0 0
      %842 = vmatpush1.bf16.xpose.msra.mxu0 0
      %843 = vmatprep.subr.bf16.mxu0 0
      %844 = vmatpush1.bf16.xpose.msra.mxu0 0
      %845 = vmatprep.subr.bf16.mxu0 0
      %846 = vmatpush1.bf16.xpose.msra.mxu0 0
      %847 = vmatprep.subr.bf16.mxu0 0
      %848 = vmatpush1.bf16.xpose.msra.mxu0 0
      %849 = vmatprep.subr.bf16.mxu0 0
      %850 = vmatpush1.bf16.xpose.msra.mxu0 0
      %851 = vmatprep.subr.bf16.mxu0 0
      %852 = vmatpush1.bf16.xpose.msra.mxu0 0
      %853 = vmatprep.subr.bf16.mxu0 0
      %854 = vmatpush1.bf16.xpose.msra.mxu0 0
      %855 = vmatprep.subr.bf16.mxu0 0
      %856 = vmatpush1.bf16.xpose.msra.mxu0 0
      %857 = vmatprep.subr.bf16.mxu0 0
      %858 = vmatpush1.bf16.xpose.msra.mxu0 0
      %859 = vmatprep.subr.bf16.mxu0 0
      %860 = vmatpush1.bf16.xpose.msra.mxu0 0
      %861 = vmatprep.mubr.bf16.mxu0 0
      %862 = vmatmul.mubr.bf16.gmra.mrb[0].mxu0 %v824
      %v863 = vpop.f32.mrb[0].mxu0
      %v864 = vadd.f32 0.0, %v863
      %v865 = vpop.f32.mrb[0].mxu0
      %v866 = vpop.f32.mrb[0].mxu0
      %v867 = vpop.f32.mrb[0].mxu0
      %868 = vdwg.mxu0
      %vm869 = vcmask 64512
      %v870 = vsel %vm869, %v864, -inf
      %871 = vmax.xlane.f32.xlu0 %v870
      %v872 = vpop.xlane.xlu0 %871
      %v873 = vsub.f32 %v864, %v872
      %v874 = vmul.f32 %v873, 1.442695
      %v875 = vpow.pop %v874
      %v876 = vsel %vm869, %v875, 0.0
      %877 = vadd.xlane.f32.xlu0 %v876
      %v878 = vpop.xlane.xlu0 %877
      %v879 = vrcp.pop %v878
      %v880 = vmul.f32 %v875, %v879
      %v881 = vpack.c.bf16 %v880, %v880
      %v883 = vsel %vm869, %v881, 0
      %vm885 = vcmask 1043456
      %v887 = vsel %vm885, %v821, 0
      %889 = vmatprep.subr.bf16.mxu0 0
      %890 = vmatpush1.bf16.msra.mxu0 %v887
      %891 = vmatprep.subr.bf16.mxu0 0
      %892 = vmatpush1.bf16.msra.mxu0 0
      %893 = vmatprep.subr.bf16.mxu0 0
      %894 = vmatpush1.bf16.msra.mxu0 0
      %895 = vmatprep.subr.bf16.mxu0 0
      %896 = vmatpush1.bf16.msra.mxu0 0
      %897 = vmatprep.subr.bf16.mxu0 0
      %898 = vmatpush1.bf16.msra.mxu0 0
      %899 = vmatprep.subr.bf16.mxu0 0
      %900 = vmatpush1.bf16.msra.mxu0 0
      %901 = vmatprep.subr.bf16.mxu0 0
      %902 = vmatpush1.bf16.msra.mxu0 0
      %903 = vmatprep.subr.bf16.mxu0 0
      %904 = vmatpush1.bf16.msra.mxu0 0
      %905 = vmatprep.subr.bf16.mxu0 0
      %906 = vmatpush1.bf16.msra.mxu0 0
      %907 = vmatprep.subr.bf16.mxu0 0
      %908 = vmatpush1.bf16.msra.mxu0 0
      %909 = vmatprep.subr.bf16.mxu0 0
      %910 = vmatpush1.bf16.msra.mxu0 0
      %911 = vmatprep.subr.bf16.mxu0 0
      %912 = vmatpush1.bf16.msra.mxu0 0
      %913 = vmatprep.subr.bf16.mxu0 0
      %914 = vmatpush1.bf16.msra.mxu0 0
      %915 = vmatprep.subr.bf16.mxu0 0
      %916 = vmatpush1.bf16.msra.mxu0 0
      %917 = vmatprep.subr.bf16.mxu0 0
      %918 = vmatpush1.bf16.msra.mxu0 0
      %919 = vmatprep.subr.bf16.mxu0 0
      %920 = vmatpush1.bf16.msra.mxu0 0
      %921 = vmatprep.mubr.bf16.mxu0 0
      %922 = vmatmul.mubr.bf16.gmra.mrb[0].mxu0 %v883
      %v923 = vpop.f32.mrb[0].mxu0
      %v924 = vadd.f32 0.0, %v923
      %v925 = vpop.f32.mrb[0].mxu0
      %v926 = vpop.f32.mrb[0].mxu0
      %v927 = vpop.f32.mrb[0].mxu0
      %928 = vdwg.mxu0
      %930 = vrot.lane.b32.xlu0 %v819, 112
      %v931 = vpop.permute.xlu0 %930
      %933 = vrot.lane.b32.xlu0 %v820, 112
      %v934 = vpop.permute.xlu0 %933
      %v936 = vsel %vm822, %v931, 0
      %v939 = vsel %vm822, %v934, 0
      %941 = vmatprep.subr.bf16.mxu0 0
      %942 = vmatpush1.bf16.xpose.msra.mxu0 %v939
      %943 = vmatprep.subr.bf16.mxu0 0
      %944 = vmatpush1.bf16.xpose.msra.mxu0 0
      %945 = vmatprep.subr.bf16.mxu0 0
      %946 = vmatpush1.bf16.xpose.msra.mxu0 0
      %947 = vmatprep.subr.bf16.mxu0 0
      %948 = vmatpush1.bf16.xpose.msra.mxu0 0
      %949 = vmatprep.subr.bf16.mxu0 0
      %950 = vmatpush1.bf16.xpose.msra.mxu0 0
      %951 = vmatprep.subr.bf16.mxu0 0
      %952 = vmatpush1.bf16.xpose.msra.mxu0 0
      %953 = vmatprep.subr.bf16.mxu0 0
      %954 = vmatpush1.bf16.xpose.msra.mxu0 0
      %955 = vmatprep.subr.bf16.mxu0 0
      %956 = vmatpush1.bf16.xpose.msra.mxu0 0
      %957 = vmatprep.subr.bf16.mxu0 0
      %958 = vmatpush1.bf16.xpose.msra.mxu0 0
      %959 = vmatprep.subr.bf16.mxu0 0
      %960 = vmatpush1.bf16.xpose.msra.mxu0 0
      %961 = vmatprep.subr.bf16.mxu0 0
      %962 = vmatpush1.bf16.xpose.msra.mxu0 0
      %963 = vmatprep.subr.bf16.mxu0 0
      %964 = vmatpush1.bf16.xpose.msra.mxu0 0
      %965 = vmatprep.subr.bf16.mxu0 0
      %966 = vmatpush1.bf16.xpose.msra.mxu0 0
      %967 = vmatprep.subr.bf16.mxu0 0
      %968 = vmatpush1.bf16.xpose.msra.mxu0 0
      %969 = vmatprep.subr.bf16.mxu0 0
      %970 = vmatpush1.bf16.xpose.msra.mxu0 0
      %971 = vmatprep.subr.bf16.mxu0 0
      %972 = vmatpush1.bf16.xpose.msra.mxu0 0
      %973 = vmatprep.mubr.bf16.mxu0 0
      %974 = vmatmul.mubr.bf16.gmra.mrb[0].mxu0 %v936
      %v975 = vpop.f32.mrb[0].mxu0
      %v976 = vadd.f32 0.0, %v975
      %v977 = vpop.f32.mrb[0].mxu0
      %v978 = vpop.f32.mrb[0].mxu0
      %v979 = vpop.f32.mrb[0].mxu0
      %980 = vdwg.mxu0
      %v981 = vsel %vm869, %v976, -inf
      %982 = vmax.xlane.f32.xlu0 %v981
      %v983 = vpop.xlane.xlu0 %982
      %v984 = vsub.f32 %v976, %v983
      %v985 = vmul.f32 %v984, 1.442695
      %v986 = vpow.pop %v985
      %v987 = vsel %vm869, %v986, 0.0
      %988 = vadd.xlane.f32.xlu0 %v987
      %v989 = vpop.xlane.xlu0 %988
      %v990 = vrcp.pop %v989
      %v991 = vmul.f32 %v986, %v990
      %v992 = vpack.c.bf16 %v991, %v991
      %994 = vrot.lane.b32.xlu0 %v821, 112
      %v995 = vpop.permute.xlu0 %994
      %v997 = vsel %vm869, %v992, 0
      %v1000 = vsel %vm885, %v995, 0
      %1002 = vmatprep.subr.bf16.mxu0 0
      %1003 = vmatpush1.bf16.msra.mxu0 %v1000
      %1004 = vmatprep.subr.bf16.mxu0 0
      %1005 = vmatpush1.bf16.msra.mxu0 0
      %1006 = vmatprep.subr.bf16.mxu0 0
      %1007 = vmatpush1.bf16.msra.mxu0 0
      %1008 = vmatprep.subr.bf16.mxu0 0
      %1009 = vmatpush1.bf16.msra.mxu0 0
      %1010 = vmatprep.subr.bf16.mxu0 0
      %1011 = vmatpush1.bf16.msra.mxu0 0
      %1012 = vmatprep.subr.bf16.mxu0 0
      %1013 = vmatpush1.bf16.msra.mxu0 0
      %1014 = vmatprep.subr.bf16.mxu0 0
      %1015 = vmatpush1.bf16.msra.mxu0 0
      %1016 = vmatprep.subr.bf16.mxu0 0
      %1017 = vmatpush1.bf16.msra.mxu0 0
      %1018 = vmatprep.subr.bf16.mxu0 0
      %1019 = vmatpush1.bf16.msra.mxu0 0
      %1020 = vmatprep.subr.bf16.mxu0 0
      %1021 = vmatpush1.bf16.msra.mxu0 0
      %1022 = vmatprep.subr.bf16.mxu0 0
      %1023 = vmatpush1.bf16.msra.mxu0 0
      %1024 = vmatprep.subr.bf16.mxu0 0
      %1025 = vmatpush1.bf16.msra.mxu0 0
      %1026 = vmatprep.subr.bf16.mxu0 0
      %1027 = vmatpush1.bf16.msra.mxu0 0
      %1028 = vmatprep.subr.bf16.mxu0 0
      %1029 = vmatpush1.bf16.msra.mxu0 0
      %1030 = vmatprep.subr.bf16.mxu0 0
      %1031 = vmatpush1.bf16.msra.mxu0 0
      %1032 = vmatprep.subr.bf16.mxu0 0
      %1033 = vmatpush1.bf16.msra.mxu0 0
      %1034 = vmatprep.mubr.bf16.mxu0 0
      %1035 = vmatmul.mubr.bf16.gmra.mrb[0].mxu0 %v997
      %v1036 = vpop.f32.mrb[0].mxu0
      %v1037 = vadd.f32 0.0, %v1036
      %v1038 = vpop.f32.mrb[0].mxu0
      %v1039 = vpop.f32.mrb[0].mxu0
      %v1040 = vpop.f32.mrb[0].mxu0
      %1041 = vdwg.mxu0
      %1042 = vrot.lane.b32.xlu0 %v819, 96
      %v1043 = vpop.permute.xlu0 %1042
      %1044 = vrot.lane.b32.xlu0 %v820, 96
      %v1045 = vpop.permute.xlu0 %1044
      %v1047 = vsel %vm822, %v1043, 0
      %v1050 = vsel %vm822, %v1045, 0
      %1052 = vmatprep.subr.bf16.mxu0 0
      %1053 = vmatpush1.bf16.xpose.msra.mxu0 %v1050
      %1054 = vmatprep.subr.bf16.mxu0 0
      %1055 = vmatpush1.bf16.xpose.msra.mxu0 0
      %1056 = vmatprep.subr.bf16.mxu0 0
      %1057 = vmatpush1.bf16.xpose.msra.mxu0 0
      %1058 = vmatprep.subr.bf16.mxu0 0
      %1059 = vmatpush1.bf16.xpose.msra.mxu0 0
      %1060 = vmatprep.subr.bf16.mxu0 0
      %1061 = vmatpush1.bf16.xpose.msra.mxu0 0
      %1062 = vmatprep.subr.bf16.mxu0 0
      %1063 = vmatpush1.bf16.xpose.msra.mxu0 0
      %1064 = vmatprep.subr.bf16.mxu0 0
      %1065 = vmatpush1.bf16.xpose.msra.mxu0 0
      %1066 = vmatprep.subr.bf16.mxu0 0
      %1067 = vmatpush1.bf16.xpose.msra.mxu0 0
      %1068 = vmatprep.subr.bf16.mxu0 0
      %1069 = vmatpush1.bf16.xpose.msra.mxu0 0
      %1070 = vmatprep.subr.bf16.mxu0 0
      %1071 = vmatpush1.bf16.xpose.msra.mxu0 0
      %1072 = vmatprep.subr.bf16.mxu0 0
      %1073 = vmatpush1.bf16.xpose.msra.mxu0 0
      %1074 = vmatprep.subr.bf16.mxu0 0
      %1075 = vmatpush1.bf16.xpose.msra.mxu0 0
      %1076 = vmatprep.subr.bf16.mxu0 0
      %1077 = vmatpush1.bf16.xpose.msra.mxu0 0
      %1078 = vmatprep.subr.bf16.mxu0 0
      %1079 = vmatpush1.bf16.xpose.msra.mxu0 0
      %1080 = vmatprep.subr.bf16.mxu0 0
      %1081 = vmatpush1.bf16.xpose.msra.mxu0 0
      %1082 = vmatprep.subr.bf16.mxu0 0
      %1083 = vmatpush1.bf16.xpose.msra.mxu0 0
      %1084 = vmatprep.mubr.bf16.mxu0 0
      %1085 = vmatmul.mubr.bf16.gmra.mrb[0].mxu0 %v1047
      %v1086 = vpop.f32.mrb[0].mxu0
      %v1087 = vadd.f32 0.0, %v1086
      %v1088 = vpop.f32.mrb[0].mxu0
      %v1089 = vpop.f32.mrb[0].mxu0
      %v1090 = vpop.f32.mrb[0].mxu0
      %1091 = vdwg.mxu0
      %v1092 = vsel %vm869, %v1087, -inf
      %1093 = vmax.xlane.f32.xlu0 %v1092
      %v1094 = vpop.xlane.xlu0 %1093
      %v1095 = vsub.f32 %v1087, %v1094
      %v1096 = vmul.f32 %v1095, 1.442695
      %v1097 = vpow.pop %v1096
      %v1098 = vsel %vm869, %v1097, 0.0
      %1099 = vadd.xlane.f32.xlu0 %v1098
      %v1100 = vpop.xlane.xlu0 %1099
      %v1101 = vrcp.pop %v1100
      %v1102 = vmul.f32 %v1097, %v1101
      %v1103 = vpack.c.bf16 %v1102, %v1102
      %1104 = vrot.lane.b32.xlu0 %v821, 96
      %v1105 = vpop.permute.xlu0 %1104
      %v1107 = vsel %vm869, %v1103, 0
      %v1110 = vsel %vm885, %v1105, 0
      %1112 = vmatprep.subr.bf16.mxu0 0
      %1113 = vmatpush1.bf16.msra.mxu0 %v1110
      %1114 = vmatprep.subr.bf16.mxu0 0
      %1115 = vmatpush1.bf16.msra.mxu0 0
      %1116 = vmatprep.subr.bf16.mxu0 0
      %1117 = vmatpush1.bf16.msra.mxu0 0
      %1118 = vmatprep.subr.bf16.mxu0 0
      %1119 = vmatpush1.bf16.msra.mxu0 0
      %1120 = vmatprep.subr.bf16.mxu0 0
      %1121 = vmatpush1.bf16.msra.mxu0 0
      %1122 = vmatprep.subr.bf16.mxu0 0
      %1123 = vmatpush1.bf16.msra.mxu0 0
      %1124 = vmatprep.subr.bf16.mxu0 0
      %1125 = vmatpush1.bf16.msra.mxu0 0
      %1126 = vmatprep.subr.bf16.mxu0 0
      %1127 = vmatpush1.bf16.msra.mxu0 0
      %1128 = vmatprep.subr.bf16.mxu0 0
      %1129 = vmatpush1.bf16.msra.mxu0 0
      %1130 = vmatprep.subr.bf16.mxu0 0
      %1131 = vmatpush1.bf16.msra.mxu0 0
      %1132 = vmatprep.subr.bf16.mxu0 0
      %1133 = vmatpush1.bf16.msra.mxu0 0
      %1134 = vmatprep.subr.bf16.mxu0 0
      %1135 = vmatpush1.bf16.msra.mxu0 0
      %1136 = vmatprep.subr.bf16.mxu0 0
      %1137 = vmatpush1.bf16.msra.mxu0 0
      %1138 = vmatprep.subr.bf16.mxu0 0
      %1139 = vmatpush1.bf16.msra.mxu0 0
      %1140 = vmatprep.subr.bf16.mxu0 0
      %1141 = vmatpush1.bf16.msra.mxu0 0
      %1142 = vmatprep.subr.bf16.mxu0 0
      %1143 = vmatpush1.bf16.msra.mxu0 0
      %1144 = vmatprep.mubr.bf16.mxu0 0
      %1145 = vmatmul.mubr.bf16.gmra.mrb[0].mxu0 %v1107
      %v1146 = vpop.f32.mrb[0].mxu0
      %v1147 = vadd.f32 0.0, %v1146
      %v1148 = vpop.f32.mrb[0].mxu0
      %v1149 = vpop.f32.mrb[0].mxu0
      %v1150 = vpop.f32.mrb[0].mxu0
      %1151 = vdwg.mxu0
      %1152 = vrot.lane.b32.xlu0 %v819, 80
      %v1153 = vpop.permute.xlu0 %1152
      %1154 = vrot.lane.b32.xlu0 %v820, 80
      %v1155 = vpop.permute.xlu0 %1154
      %v1157 = vsel %vm822, %v1153, 0
      %v1160 = vsel %vm822, %v1155, 0
      %1162 = vmatprep.subr.bf16.mxu0 0
      %1163 = vmatpush1.bf16.xpose.msra.mxu0 %v1160
      %1164 = vmatprep.subr.bf16.mxu0 0
      %1165 = vmatpush1.bf16.xpose.msra.mxu0 0
      %1166 = vmatprep.subr.bf16.mxu0 0
      %1167 = vmatpush1.bf16.xpose.msra.mxu0 0
      %1168 = vmatprep.subr.bf16.mxu0 0
      %1169 = vmatpush1.bf16.xpose.msra.mxu0 0
      %1170 = vmatprep.subr.bf16.mxu0 0
      %1171 = vmatpush1.bf16.xpose.msra.mxu0 0
      %1172 = vmatprep.subr.bf16.mxu0 0
      %1173 = vmatpush1.bf16.xpose.msra.mxu0 0
      %1174 = vmatprep.subr.bf16.mxu0 0
      %1175 = vmatpush1.bf16.xpose.msra.mxu0 0
      %1176 = vmatprep.subr.bf16.mxu0 0
      %1177 = vmatpush1.bf16.xpose.msra.mxu0 0
      %1178 = vmatprep.subr.bf16.mxu0 0
      %1179 = vmatpush1.bf16.xpose.msra.mxu0 0
      %1180 = vmatprep.subr.bf16.mxu0 0
      %1181 = vmatpush1.bf16.xpose.msra.mxu0 0
      %1182 = vmatprep.subr.bf16.mxu0 0
      %1183 = vmatpush1.bf16.xpose.msra.mxu0 0
      %1184 = vmatprep.subr.bf16.mxu0 0
      %1185 = vmatpush1.bf16.xpose.msra.mxu0 0
      %1186 = vmatprep.subr.bf16.mxu0 0
      %1187 = vmatpush1.bf16.xpose.msra.mxu0 0
      %1188 = vmatprep.subr.bf16.mxu0 0
      %1189 = vmatpush1.bf16.xpose.msra.mxu0 0
      %1190 = vmatprep.subr.bf16.mxu0 0
      %1191 = vmatpush1.bf16.xpose.msra.mxu0 0
      %1192 = vmatprep.subr.bf16.mxu0 0
      %1193 = vmatpush1.bf16.xpose.msra.mxu0 0
      %1194 = vmatprep.mubr.bf16.mxu0 0
      %1195 = vmatmul.mubr.bf16.gmra.mrb[0].mxu0 %v1157
      %v1196 = vpop.f32.mrb[0].mxu0
      %v1197 = vadd.f32 0.0, %v1196
      %v1198 = vpop.f32.mrb[0].mxu0
      %v1199 = vpop.f32.mrb[0].mxu0
      %v1200 = vpop.f32.mrb[0].mxu0
      %1201 = vdwg.mxu0
      %v1202 = vsel %vm869, %v1197, -inf
      %1203 = vmax.xlane.f32.xlu0 %v1202
      %v1204 = vpop.xlane.xlu0 %1203
      %v1205 = vsub.f32 %v1197, %v1204
      %v1206 = vmul.f32 %v1205, 1.442695
      %v1207 = vpow.pop %v1206
      %v1208 = vsel %vm869, %v1207, 0.0
      %1209 = vadd.xlane.f32.xlu0 %v1208
      %v1210 = vpop.xlane.xlu0 %1209
      %v1211 = vrcp.pop %v1210
      %v1212 = vmul.f32 %v1207, %v1211
      %v1213 = vpack.c.bf16 %v1212, %v1212
      %1214 = vrot.lane.b32.xlu0 %v821, 80
      %v1215 = vpop.permute.xlu0 %1214
      %v1217 = vsel %vm869, %v1213, 0
      %v1220 = vsel %vm885, %v1215, 0
      %1222 = vmatprep.subr.bf16.mxu0 0
      %1223 = vmatpush1.bf16.msra.mxu0 %v1220
      %1224 = vmatprep.subr.bf16.mxu0 0
      %1225 = vmatpush1.bf16.msra.mxu0 0
      %1226 = vmatprep.subr.bf16.mxu0 0
      %1227 = vmatpush1.bf16.msra.mxu0 0
      %1228 = vmatprep.subr.bf16.mxu0 0
      %1229 = vmatpush1.bf16.msra.mxu0 0
      %1230 = vmatprep.subr.bf16.mxu0 0
      %1231 = vmatpush1.bf16.msra.mxu0 0
      %1232 = vmatprep.subr.bf16.mxu0 0
      %1233 = vmatpush1.bf16.msra.mxu0 0
      %1234 = vmatprep.subr.bf16.mxu0 0
      %1235 = vmatpush1.bf16.msra.mxu0 0
      %1236 = vmatprep.subr.bf16.mxu0 0
      %1237 = vmatpush1.bf16.msra.mxu0 0
      %1238 = vmatprep.subr.bf16.mxu0 0
      %1239 = vmatpush1.bf16.msra.mxu0 0
      %1240 = vmatprep.subr.bf16.mxu0 0
      %1241 = vmatpush1.bf16.msra.mxu0 0
      %1242 = vmatprep.subr.bf16.mxu0 0
      %1243 = vmatpush1.bf16.msra.mxu0 0
      %1244 = vmatprep.subr.bf16.mxu0 0
      %1245 = vmatpush1.bf16.msra.mxu0 0
      %1246 = vmatprep.subr.bf16.mxu0 0
      %1247 = vmatpush1.bf16.msra.mxu0 0
      %1248 = vmatprep.subr.bf16.mxu0 0
      %1249 = vmatpush1.bf16.msra.mxu0 0
      %1250 = vmatprep.subr.bf16.mxu0 0
      %1251 = vmatpush1.bf16.msra.mxu0 0
      %1252 = vmatprep.subr.bf16.mxu0 0
      %1253 = vmatpush1.bf16.msra.mxu0 0
      %1254 = vmatprep.mubr.bf16.mxu0 0
      %1255 = vmatmul.mubr.bf16.gmra.mrb[0].mxu0 %v1217
      %v1256 = vpop.f32.mrb[0].mxu0
      %v1257 = vadd.f32 0.0, %v1256
      %v1258 = vpop.f32.mrb[0].mxu0
      %v1259 = vpop.f32.mrb[0].mxu0
      %v1260 = vpop.f32.mrb[0].mxu0
      %1261 = vdwg.mxu0
      %1263 = vrot.lane.b32.xlu0 %v1037, 16
      %v1264 = vpop.permute.xlu0 %1263
      %1267 = vrot.lane.b32.xlu0 %v1147, 32
      %v1268 = vpop.permute.xlu0 %1267
      %1271 = vrot.lane.b32.xlu0 %v1257, 48
      %v1272 = vpop.permute.xlu0 %1271
      %v1274 = vsel %vm822, %v924, %v1264
      %vm1275 = vcmask 261120
      %v1276 = vsel %vm1275, %v1274, %v1268
      %vm1277 = vcmask 392192
      %v1278 = vsel %vm1277, %v1276, %v1272
      %v1279 = vpack.c.bf16 %v1278, %v1278
      %v1280 = vld [vmem:[%s9] sm:$0xf]
      %v1281 = vld [vmem:[%s9 + $0x4] sm:$0xf]
      %v1282 = vld [vmem:[%s9 + $0x8] sm:$0xf]
      %v1283 = vld [vmem:[%s9 + $0xc] sm:$0xf]
      %v1284 = vld [vmem:[%s9 + $0x10] sm:$0xf]
      %v1285 = vld [vmem:[%s9 + $0x14] sm:$0xf]
      %v1286 = vld [vmem:[%s9 + $0x18] sm:$0xf]
      %v1287 = vld [vmem:[%s9 + $0x1c] sm:$0xf]
      %v1288 = vld [vmem:[%s10] sm:$0x1]
      %v1290 = vlaneseq
      %v1291 = vshrl.u32 %v1290, 7
      %v1292 = vsub.s32 0, %v1291
      %v1293 = vrot.slane %v1288, %v1292
      %v1303 = vunpack.c.l.b16 %v1280
      %v1304 = vunpack.c.l.b16 %v1281
      %v1305 = vunpack.c.l.b16 %v1282
      %v1306 = vunpack.c.l.b16 %v1283
      %v1307 = vunpack.c.l.b16 %v1284
      %v1308 = vunpack.c.l.b16 %v1285
      %v1309 = vunpack.c.l.b16 %v1286
      %v1310 = vunpack.c.l.b16 %v1287
      %v1311 = vpack.c.b16 %v1304, %v1303
      %v1312 = vpack.c.b16 %v1306, %v1305
      %v1313 = vpack.c.b16 %v1308, %v1307
      %v1314 = vpack.c.b16 %v1310, %v1309
      %v1320 = vsel %vm546, %v1279, 0
      %1322 = vmatprep.subr.bf16.mxu0 0
      %1323 = vmatpush1.bf16.msra.mxu0 %v1311
      %1324 = vmatprep.subr.bf16.mxu0 0
      %1325 = vmatpush1.bf16.msra.mxu0 %v1312
      %1326 = vmatprep.subr.bf16.mxu0 0
      %1327 = vmatpush1.bf16.msra.mxu0 %v1313
      %1328 = vmatprep.subr.bf16.mxu0 0
      %1329 = vmatpush1.bf16.msra.mxu0 %v1314
      %1330 = vmatprep.subr.bf16.mxu0 0
      %1331 = vmatpush1.bf16.msra.mxu0 0
      %1332 = vmatprep.subr.bf16.mxu0 0
      %1333 = vmatpush1.bf16.msra.mxu0 0
      %1334 = vmatprep.subr.bf16.mxu0 0
      %1335 = vmatpush1.bf16.msra.mxu0 0
      %1336 = vmatprep.subr.bf16.mxu0 0
      %1337 = vmatpush1.bf16.msra.mxu0 0
      %1338 = vmatprep.subr.bf16.mxu0 0
      %1339 = vmatpush1.bf16.msra.mxu0 0
      %1340 = vmatprep.subr.bf16.mxu0 0
      %1341 = vmatpush1.bf16.msra.mxu0 0
      %1342 = vmatprep.subr.bf16.mxu0 0
      %1343 = vmatpush1.bf16.msra.mxu0 0
      %1344 = vmatprep.subr.bf16.mxu0 0
      %1345 = vmatpush1.bf16.msra.mxu0 0
      %1346 = vmatprep.subr.bf16.mxu0 0
      %1347 = vmatpush1.bf16.msra.mxu0 0
      %1348 = vmatprep.subr.bf16.mxu0 0
      %1349 = vmatpush1.bf16.msra.mxu0 0
      %1350 = vmatprep.subr.bf16.mxu0 0
      %1351 = vmatpush1.bf16.msra.mxu0 0
      %1352 = vmatprep.subr.bf16.mxu0 0
      %1353 = vmatpush1.bf16.msra.mxu0 0
      %1354 = vmatprep.mubr.bf16.mxu0 0
      %1355 = vmatmul.mubr.bf16.gmra.mrb[0].mxu0 %v1320
      %v1356 = vpop.f32.mrb[0].mxu0
      %v1357 = vadd.f32 %v1293, %v1356
      %v1358 = vpop.f32.mrb[0].mxu0
      %v1359 = vpop.f32.mrb[0].mxu0
      %v1360 = vpop.f32.mrb[0].mxu0
      %1361 = vdwg.mxu0
      %v1362 = vadd.f32 %v545, %v1357
      %v1363 = vsel %vm546, %v1362, 0.0
      %1364 = vadd.xlane.f32.xlu0 %v1363
      %v1365 = vpop.xlane.xlu0 %1364
      %v1366 = vmul.f32 %v1365, %v550
      %v1367 = vsub.f32 %v1362, %v1366
      %v1368 = vmul.f32 %v1367, %v1367
      %v1369 = vsel %vm546, %v1368, 0.0
      %1370 = vadd.xlane.f32.xlu0 %v1369
      %v1371 = vpop.xlane.xlu0 %1370
      %v1372 = vmul.f32 %v1371, %v550
      %v1373 = vadd.f32 %v1372, 1e-05
      %v1374 = vrsqrt.pop %v1373
      %v1375 = vmul.f32 %v1367, %v1374
      %v1376 = vld [vmem:[%s11] sm:$0x1]
      %v1378 = vlaneseq
      %v1379 = vshrl.u32 %v1378, 7
      %v1380 = vsub.s32 0, %v1379
      %v1381 = vrot.slane %v1376, %v1380
      %v1383 = vmul.f32 %v1375, %v1381
      %v1384 = vld [vmem:[%s12] sm:$0x1]
      %v1386 = vlaneseq
      %v1387 = vshrl.u32 %v1386, 7
      %v1388 = vsub.s32 0, %v1387
      %v1389 = vrot.slane %v1384, %v1388
      %v1391 = vadd.f32 %v1383, %v1389
      %v1392 = vpack.c.bf16 %v1391, %v1391
      %v1393 = vld [vmem:[%s13] sm:$0xff]
      %v1394 = vld [vmem:[%s13 + $0x8] sm:$0xff]
      %v1395 = vld [vmem:[%s13 + $0x10] sm:$0xff]
      %v1396 = vld [vmem:[%s13 + $0x18] sm:$0xff]
      %v1397 = vld [vmem:[%s13 + $0x20] sm:$0xff]
      %v1398 = vld [vmem:[%s13 + $0x28] sm:$0xff]
      %v1399 = vld [vmem:[%s13 + $0x30] sm:$0xff]
      %v1400 = vld [vmem:[%s13 + $0x38] sm:$0xff]
      %v1401 = vld [vmem:[%s14] sm:$0x3]
      %v1403 = vlaneseq
      %v1404 = vshrl.u32 %v1403, 7
      %v1405 = vsub.s32 0, %v1404
      %v1406 = vrot.slane %v1401, %v1405
      %v1407 = vlaneseq
      %v1408 = vshrl.u32 %v1407, 7
      %v1409 = vsub.s32 1, %v1408
      %v1410 = vrot.slane %v1401, %v1409
      %v1421 = vunpack.c.l.b16 %v1393
      %v1422 = vunpack.c.h.b16 %v1393
      %v1423 = vunpack.c.l.b16 %v1394
      %v1424 = vunpack.c.h.b16 %v1394
      %v1425 = vunpack.c.l.b16 %v1395
      %v1426 = vunpack.c.h.b16 %v1395
      %v1427 = vunpack.c.l.b16 %v1396
      %v1428 = vunpack.c.h.b16 %v1396
      %v1429 = vunpack.c.l.b16 %v1397
      %v1430 = vunpack.c.h.b16 %v1397
      %v1431 = vunpack.c.l.b16 %v1398
      %v1432 = vunpack.c.h.b16 %v1398
      %v1433 = vunpack.c.l.b16 %v1399
      %v1434 = vunpack.c.h.b16 %v1399
      %v1435 = vunpack.c.l.b16 %v1400
      %v1436 = vunpack.c.h.b16 %v1400
      %v1437 = vpack.c.b16 %v1423, %v1421
      %v1438 = vpack.c.b16 %v1424, %v1422
      %v1439 = vpack.c.b16 %v1427, %v1425
      %v1440 = vpack.c.b16 %v1428, %v1426
      %v1441 = vpack.c.b16 %v1431, %v1429
      %v1442 = vpack.c.b16 %v1432, %v1430
      %v1443 = vpack.c.b16 %v1435, %v1433
      %v1444 = vpack.c.b16 %v1436, %v1434
      %v1454 = vsel %vm546, %v1392, 0
      %1456 = vmatprep.subr.bf16.mxu0 %v1438
      %1457 = vmatpush1.bf16.msra.mxu0 %v1437
      %1458 = vmatprep.subr.bf16.mxu0 %v1440
      %1459 = vmatpush1.bf16.msra.mxu0 %v1439
      %1460 = vmatprep.subr.bf16.mxu0 %v1442
      %1461 = vmatpush1.bf16.msra.mxu0 %v1441
      %1462 = vmatprep.subr.bf16.mxu0 %v1444
      %1463 = vmatpush1.bf16.msra.mxu0 %v1443
      %1464 = vmatprep.subr.bf16.mxu0 0
      %1465 = vmatpush1.bf16.msra.mxu0 0
      %1466 = vmatprep.subr.bf16.mxu0 0
      %1467 = vmatpush1.bf16.msra.mxu0 0
      %1468 = vmatprep.subr.bf16.mxu0 0
      %1469 = vmatpush1.bf16.msra.mxu0 0
      %1470 = vmatprep.subr.bf16.mxu0 0
      %1471 = vmatpush1.bf16.msra.mxu0 0
      %1472 = vmatprep.subr.bf16.mxu0 0
      %1473 = vmatpush1.bf16.msra.mxu0 0
      %1474 = vmatprep.subr.bf16.mxu0 0
      %1475 = vmatpush1.bf16.msra.mxu0 0
      %1476 = vmatprep.subr.bf16.mxu0 0
      %1477 = vmatpush1.bf16.msra.mxu0 0
      %1478 = vmatprep.subr.bf16.mxu0 0
      %1479 = vmatpush1.bf16.msra.mxu0 0
      %1480 = vmatprep.subr.bf16.mxu0 0
      %1481 = vmatpush1.bf16.msra.mxu0 0
      %1482 = vmatprep.subr.bf16.mxu0 0
      %1483 = vmatpush1.bf16.msra.mxu0 0
      %1484 = vmatprep.subr.bf16.mxu0 0
      %1485 = vmatpush1.bf16.msra.mxu0 0
      %1486 = vmatprep.subr.bf16.mxu0 0
      %1487 = vmatpush1.bf16.msra.mxu0 0
      %1488 = vmatprep.mubr.bf16.mxu0 0
      %1489 = vmatmul.mubr.bf16.gmra.mrb[0].mxu0 %v1454
      %v1490 = vpop.f32.mrb[0].mxu0
      %v1491 = vadd.f32 %v1406, %v1490
      %v1492 = vpop.f32.mrb[0].mxu0
      %v1493 = vadd.f32 %v1410, %v1492
      %v1494 = vpop.f32.mrb[0].mxu0
      %v1495 = vpop.f32.mrb[0].mxu0
      %1496 = vdwg.mxu0
      %v1497 = vmul.f32 %v1491, 1.702
      %v1498 = vmul.f32 %v1493, 1.702
      %v1499 = vxor.u32 %v1497, 2147483648
      %v1500 = vxor.u32 %v1498, 2147483648
      %v1501 = vmul.f32 %v1499, 1.442695
      %v1502 = vpow.pop %v1501
      %v1503 = vmul.f32 %v1500, 1.442695
      %v1504 = vpow.pop %v1503
      %v1505 = vadd.f32 %v1502, 1.0
      %v1506 = vadd.f32 %v1504, 1.0
      %v1507 = vrcp.pop %v1505
      %v1508 = vmul.f32 1.0, %v1507
      %v1509 = vrcp.pop %v1506
      %v1510 = vmul.f32 1.0, %v1509
      %v1511 = vmul.f32 %v1491, %v1508
      %v1512 = vmul.f32 %v1493, %v1510
      %v1513 = vpack.c.bf16 %v1511, %v1511
      %v1514 = vpack.c.bf16 %v1512, %v1512
      %v1515 = vld [vmem:[%s15] sm:$0xf]
      %v1516 = vld [vmem:[%s15 + $0x4] sm:$0xf]
      %v1517 = vld [vmem:[%s15 + $0x8] sm:$0xf]
      %v1518 = vld [vmem:[%s15 + $0xc] sm:$0xf]
      %v1519 = vld [vmem:[%s15 + $0x10] sm:$0xf]
      %v1520 = vld [vmem:[%s15 + $0x14] sm:$0xf]
      %v1521 = vld [vmem:[%s15 + $0x18] sm:$0xf]
      %v1522 = vld [vmem:[%s15 + $0x1c] sm:$0xf]
      %v1523 = vld [vmem:[%s15 + $0x20] sm:$0xf]
      %v1524 = vld [vmem:[%s15 + $0x24] sm:$0xf]
      %v1525 = vld [vmem:[%s15 + $0x28] sm:$0xf]
      %v1526 = vld [vmem:[%s15 + $0x2c] sm:$0xf]
      %v1527 = vld [vmem:[%s15 + $0x30] sm:$0xf]
      %v1528 = vld [vmem:[%s15 + $0x34] sm:$0xf]
      %v1529 = vld [vmem:[%s15 + $0x38] sm:$0xf]
      %v1530 = vld [vmem:[%s15 + $0x3c] sm:$0xf]
      %v1531 = vld [vmem:[%s15 + $0x40] sm:$0xf]
      %v1532 = vld [vmem:[%s15 + $0x44] sm:$0xf]
      %v1533 = vld [vmem:[%s15 + $0x48] sm:$0xf]
      %v1534 = vld [vmem:[%s15 + $0x4c] sm:$0xf]
      %v1535 = vld [vmem:[%s15 + $0x50] sm:$0xf]
      %v1536 = vld [vmem:[%s15 + $0x54] sm:$0xf]
      %v1537 = vld [vmem:[%s15 + $0x58] sm:$0xf]
      %v1538 = vld [vmem:[%s15 + $0x5c] sm:$0xf]
      %v1539 = vld [vmem:[%s15 + $0x60] sm:$0xf]
      %v1540 = vld [vmem:[%s15 + $0x64] sm:$0xf]
      %v1541 = vld [vmem:[%s15 + $0x68] sm:$0xf]
      %v1542 = vld [vmem:[%s15 + $0x6c] sm:$0xf]
      %v1543 = vld [vmem:[%s15 + $0x70] sm:$0xf]
      %v1544 = vld [vmem:[%s15 + $0x74] sm:$0xf]
      %v1545 = vld [vmem:[%s15 + $0x78] sm:$0xf]
      %v1546 = vld [vmem:[%s15 + $0x7c] sm:$0xf]
      %v1547 = vld [vmem:[%s16] sm:$0x1]
      %v1549 = vlaneseq
      %v1550 = vshrl.u32 %v1549, 7
      %v1551 = vsub.s32 0, %v1550
      %v1552 = vrot.slane %v1547, %v1551
      %v1586 = vunpack.c.l.b16 %v1515
      %v1587 = vunpack.c.l.b16 %v1516
      %v1588 = vunpack.c.l.b16 %v1517
      %v1589 = vunpack.c.l.b16 %v1518
      %v1590 = vunpack.c.l.b16 %v1519
      %v1591 = vunpack.c.l.b16 %v1520
      %v1592 = vunpack.c.l.b16 %v1521
      %v1593 = vunpack.c.l.b16 %v1522
      %v1594 = vunpack.c.l.b16 %v1523
      %v1595 = vunpack.c.l.b16 %v1524
      %v1596 = vunpack.c.l.b16 %v1525
      %v1597 = vunpack.c.l.b16 %v1526
      %v1598 = vunpack.c.l.b16 %v1527
      %v1599 = vunpack.c.l.b16 %v1528
      %v1600 = vunpack.c.l.b16 %v1529
      %v1601 = vunpack.c.l.b16 %v1530
      %v1602 = vunpack.c.l.b16 %v1531
      %v1603 = vunpack.c.l.b16 %v1532
      %v1604 = vunpack.c.l.b16 %v1533
      %v1605 = vunpack.c.l.b16 %v1534
      %v1606 = vunpack.c.l.b16 %v1535
      %v1607 = vunpack.c.l.b16 %v1536
      %v1608 = vunpack.c.l.b16 %v1537
      %v1609 = vunpack.c.l.b16 %v1538
      %v1610 = vunpack.c.l.b16 %v1539
      %v1611 = vunpack.c.l.b16 %v1540
      %v1612 = vunpack.c.l.b16 %v1541
      %v1613 = vunpack.c.l.b16 %v1542
      %v1614 = vunpack.c.l.b16 %v1543
      %v1615 = vunpack.c.l.b16 %v1544
      %v1616 = vunpack.c.l.b16 %v1545
      %v1617 = vunpack.c.l.b16 %v1546
      %v1618 = vpack.c.b16 %v1587, %v1586
      %v1619 = vpack.c.b16 %v1589, %v1588
      %v1620 = vpack.c.b16 %v1591, %v1590
      %v1621 = vpack.c.b16 %v1593, %v1592
      %v1622 = vpack.c.b16 %v1595, %v1594
      %v1623 = vpack.c.b16 %v1597, %v1596
      %v1624 = vpack.c.b16 %v1599, %v1598
      %v1625 = vpack.c.b16 %v1601, %v1600
      %v1626 = vpack.c.b16 %v1603, %v1602
      %v1627 = vpack.c.b16 %v1605, %v1604
      %v1628 = vpack.c.b16 %v1607, %v1606
      %v1629 = vpack.c.b16 %v1609, %v1608
      %v1630 = vpack.c.b16 %v1611, %v1610
      %v1631 = vpack.c.b16 %v1613, %v1612
      %v1632 = vpack.c.b16 %v1615, %v1614
      %v1633 = vpack.c.b16 %v1617, %v1616
      %1650 = vmatprep.subr.bf16.mxu0 0
      %1651 = vmatpush1.bf16.msra.mxu0 %v1618
      %1652 = vmatprep.subr.bf16.mxu0 0
      %1653 = vmatpush1.bf16.msra.mxu0 %v1619
      %1654 = vmatprep.subr.bf16.mxu0 0
      %1655 = vmatpush1.bf16.msra.mxu0 %v1620
      %1656 = vmatprep.subr.bf16.mxu0 0
      %1657 = vmatpush1.bf16.msra.mxu0 %v1621
      %1658 = vmatprep.subr.bf16.mxu0 0
      %1659 = vmatpush1.bf16.msra.mxu0 %v1622
      %1660 = vmatprep.subr.bf16.mxu0 0
      %1661 = vmatpush1.bf16.msra.mxu0 %v1623
      %1662 = vmatprep.subr.bf16.mxu0 0
      %1663 = vmatpush1.bf16.msra.mxu0 %v1624
      %1664 = vmatprep.subr.bf16.mxu0 0
      %1665 = vmatpush1.bf16.msra.mxu0 %v1625
      %1666 = vmatprep.subr.bf16.mxu0 0
      %1667 = vmatpush1.bf16.msra.mxu0 %v1626
      %1668 = vmatprep.subr.bf16.mxu0 0
      %1669 = vmatpush1.bf16.msra.mxu0 %v1627
      %1670 = vmatprep.subr.bf16.mxu0 0
      %1671 = vmatpush1.bf16.msra.mxu0 %v1628
      %1672 = vmatprep.subr.bf16.mxu0 0
      %1673 = vmatpush1.bf16.msra.mxu0 %v1629
      %1674 = vmatprep.subr.bf16.mxu0 0
      %1675 = vmatpush1.bf16.msra.mxu0 %v1630
      %1676 = vmatprep.subr.bf16.mxu0 0
      %1677 = vmatpush1.bf16.msra.mxu0 %v1631
      %1678 = vmatprep.subr.bf16.mxu0 0
      %1679 = vmatpush1.bf16.msra.mxu0 %v1632
      %1680 = vmatprep.subr.bf16.mxu0 0
      %1681 = vmatpush1.bf16.msra.mxu0 %v1633
      %1682 = vmatprep.mubr.bf16.mxu0 %v1514
      %1683 = vmatmul.mubr.bf16.gmra.mrb[0].mxu0 %v1513
      %v1684 = vpop.f32.mrb[0].mxu0
      %v1685 = vadd.f32 %v1552, %v1684
      %v1686 = vpop.f32.mrb[0].mxu0
      %v1687 = vpop.f32.mrb[0].mxu0
      %v1688 = vpop.f32.mrb[0].mxu0
      %1689 = vdwg.mxu0
      %v1690 = vadd.f32 %v1362, %v1685
      %1691 = vst.msk [vmem:[%s543] sm:$0xff] %vm546, %v1690
      %p1692 = scmp.lt.s32.totalorder %s28, 1
      %s1693 = scalar_select %p1692, %s28, 1
      %s1694 = smul.addr %s1693, 8
      %s1695 = scalar_lea.vmem %s17, %s1694
      // Predicated region
      $region89: #{transformer_forward.3} parent=87 // pred_check
        %p1696 = pneg %p408
      $region90: #{transformer_forward.3} parent=87 // pred_check_branch
        %1698 = sbr.rel (%p1696) target = $region92
      $region91: #{transformer_forward.3} parent=87 // pred_region
        _
      $region92: #{transformer_forward.3} parent=87 // pred_fallthru
        _
    $region88: #{transformer_forward.3} parent=5 // pred_fallthru
      _
    %p1699 = scmp.le.s32.totalorder 2, %s23
    // Predicated region
    $region93: #{transformer_forward.3} parent=5 // pred_check
      %p1700 = pneg %p1699
    $region94: #{transformer_forward.3} parent=5 // pred_check_branch
      %1702 = sbr.rel (%p1700) target = $region96
    $region95: #{transformer_forward.3} parent=5 // pred_region
      %s1703 = ssub.s32 %s23, 2
      // Predicated region
      $region97: #{transformer_forward.3} parent=95 // pred_check
        %p1704 = pneg %p414
      $region98: #{transformer_forward.3} parent=95 // pred_check_branch
        %1706 = sbr.rel (%p1704) target = $region100
      $region99: #{transformer_forward.3} parent=95 // pred_region
        %p1707 = scmp.lt.s32.totalorder %s29, 1
        %s1708 = scalar_select %p1707, %s29, 1
        %s1709 = smul.addr %s1708, 8
        %s1710 = scalar_lea.vmem %s17, %s1709
      $region100: #{transformer_forward.3} parent=95 // pred_fallthru
        _
    $region96: #{transformer_forward.3} parent=5 // pred_fallthru
      _
  $region6: #{transformer_forward.3} parent=0 // loop_footer
    %s27 = sadd.s32 1, %s23
  $region7: #{transformer_forward.3} parent=0 // loop_footer_branch
    %22 = sbr.rel target = $region3
  $region8: #{transformer_forward.3} parent=0 // loop_exit
    _

</llo_original>
